<compile_context>
chip_gen: v7x
topology: tpu7x:2x2x1
jax: 0.10.0
libtpu: 0.0.40
codegen_flags: <defaults>
</compile_context>

<pallas_src>
import math
from functools import partial
from typing import NamedTuple

import jax
import jax.numpy as jnp
import numpy as np
from jax.experimental import pallas as pl
from jax.experimental.pallas import tpu as pltpu

EPS = 1e-5
_LOG_2PI = math.log(2.0 * math.pi)


# ---------------------------------------------------------------------------
# In-kernel math helpers (shared with the pure-JAX reference via `recip=`)
# ---------------------------------------------------------------------------
def _fast_recip(a):
    """EUP approximate reciprocal + one Newton-Raphson step (VPU) -> no f32 divide."""
    r = pl.reciprocal(a, approx=True)
    return r * (2.0 - a * r)


def _log_ive_half_integer(k, m, recip):
    """log(exp(-k) * I_{m/2-1}(k)) for odd m.

    kappa >= 0.5: half-integer closed forms + upward recurrence.
    kappa <  0.5: ascending series (the recurrence cancels catastrophically in
    f32 for small kappa -- review correctness item).  No expm1 needed: the
    subtraction 1 - e^{-2k} is only used on the k >= 0.5 branch.
    """
    nu = m / 2.0 - 1.0
    # --- recurrence branch (k >= ~0.5) ---
    inv_k = recip(k)
    pref = jnp.sqrt((2.0 / math.pi) * inv_k)
    em2k = jnp.exp(-2.0 * k)
    ive_lo = pref * 0.5 * (1.0 + em2k)          # order -1/2
    ive_hi = pref * 0.5 * (1.0 - em2k)          # order +1/2
    order = 0.5
    while order < nu - 1e-9:                    # static (trace-time) loop
        ive_lo, ive_hi = ive_hi, ive_lo - (2.0 * order) * inv_k * ive_hi
        order += 1.0
    log_rec = jnp.log(jnp.maximum(ive_hi, 1e-37))
    # --- small-kappa ascending series: I_nu(k) = (k/2)^nu sum_j (k^2/4)^j/(j! G(nu+j+1))
    t = 0.25 * k * k
    c0 = 1.0 / math.gamma(nu + 1.0)
    c1 = 1.0 / math.gamma(nu + 2.0)
    c2 = 0.5 / math.gamma(nu + 3.0)
    c3 = 1.0 / (6.0 * math.gamma(nu + 4.0))
    log_ser = nu * jnp.log(0.5 * k) - k + jnp.log(c0 + t * (c1 + t * (c2 + t * c3)))
    return jnp.where(k < 0.5, log_ser, log_rec)


def _build_x(w, v, recip):
    """x = [w, sqrt(1-w^2) * v/||v||] stacked on the leading M axis."""
    v_sq = jnp.sum(v * v, axis=0, keepdims=True)                 # leading-axis sum: VPU
    v_hat = v * recip(jnp.sqrt(jnp.maximum(v_sq, 1e-20)))        # floored -> no NaN recip
    w_tang = jnp.sqrt(jnp.maximum(1.0 - w * w, 1e-10))
    return jnp.concatenate([w, w_tang * v_hat], axis=0)          # [M, NV, 8, Q]


def _vmf_math(km, x, m, recip):
    """vMF scale/loc, Householder rotation and log-prob.

    km: [M, NV, 1, Q]  (kappa-derived math runs once per batch column)
    x : [M, NV, 8, Q]
    """
    scale = jnp.sqrt(jnp.sum(km * km, axis=0, keepdims=True))    # [1, NV, 1, Q]
    loc = km * recip(scale + EPS)                                # [M, NV, 1, Q]

    # Householder u = normalize(e1 - loc), built by leading-plane arithmetic.
    u = jnp.concatenate([1.0 - loc[0:1], -loc[1:]], axis=0)      # [M, NV, 1, Q]
    u = u * recip(jnp.sqrt(jnp.sum(u * u, axis=0, keepdims=True)) + 1e-5)

    xu = jnp.sum(x * u, axis=0, keepdims=True)                   # [1, NV, 8, Q]
    z = x - 2.0 * xu * u                                         # [M, NV, 8, Q]

    # log prob:  k*(loc.z) + (m/2-1)log(k) - (m/2)log(2pi) - k - log(ive)
    k_safe = jnp.maximum(scale, 1e-6)    # torch yields nan/inf at ||kappa_mu|| ~ 0
    unnorm = scale * jnp.sum(loc * z, axis=0, keepdims=True)     # [1, NV, 8, Q]
    log_ive = _log_ive_half_integer(k_safe, m, recip)            # [1, NV, 1, Q]
    log_c = ((m / 2.0 - 1.0) * jnp.log(k_safe)
             - (m / 2.0) * _LOG_2PI
             - (k_safe + log_ive))                               # [1, NV, 1, Q]
    per_comp = unnorm + log_c                                    # [1, NV, 8, Q]
    lp = jnp.sum(per_comp[0], axis=0)                            # [8, Q] (VPU plane adds)
    return z, lp


# ---------------------------------------------------------------------------
# Pallas kernel
# ---------------------------------------------------------------------------
def _vmf_forward_kernel(km_ref, w_ref, v_ref, z_ref, lp_ref, *, m):
    km = km_ref[...].astype(jnp.float32)      # [M,   NV, 1, TQ]
    w = w_ref[...].astype(jnp.float32)        # [1,   NV, 8, TQ]
    v = v_ref[...].astype(jnp.float32)        # [M-1, NV, 8, TQ]
    x = _build_x(w, v, _fast_recip)           # [M,   NV, 8, TQ]
    z, lp = _vmf_math(km, x, m, _fast_recip)
    z_ref[...] = z.astype(z_ref.dtype)
    lp_ref[...] = lp.astype(lp_ref.dtype)


# ---------------------------------------------------------------------------
# Layout planning + host-side plumbing
# ---------------------------------------------------------------------------
class _Plan(NamedTuple):
    B: int          # real batch
    NS: int         # real sample count
    Bq: int         # batch width used on the lane axis (== B, or padded to 128x)
    Gp: int         # sublane-groups of samples (>= ceil(NS/8))
    Qp: int         # total lane extent = Gp * Bq (multiple of 128)
    TQ: int         # lane tile (multiple of 128, divides Qp)
    wrap: bool      # km passed at width Bq with wrapping index_map (vs. one tile)
    n_steps: int


def _round_up(x, mult):
    return ((x + mult - 1) // mult) * mult


def _plan_layout(ns, b, lane_cap=1024):
    """Pick the (8, Qp) slot fold, the lane tile and the km dedup mode.

    lane_cap ~ per-generation tile cap: 1024 is safe for v7x (32 MiB scoped
    VMEM); v5e/v6e (128 MiB VMEM) can use 2048-4096.
    """
    g0 = max(1, -(-ns // 8))                     # ceil(NS / 8)
    period = 128 // math.gcd(b, 128)             # sublane-groups per 128-aligned b chunk
    unit = period * b                            # lanes: multiple of 128, whole b periods
    if unit <= lane_cap:
        # "tile" km mode: each lane tile holds whole b-periods; km replicated to
        # exactly one tile and reused by every grid step (constant index_map).
        wrap = False
        bq = b
        gp = _round_up(g0, period)
        qp = gp * b
        total_units = gp // period
        max_units = max(1, lane_cap // unit)
        best = 1
        for u in range(1, min(total_units, max_units) + 1):
            if total_units % u == 0:
                best = u
        if total_units >= 2 and total_units // best < 2:
            # prefer >= 2 grid steps (v7x 2-TC split / pipelining)
            for u in range(min(total_units // 2, max_units), 0, -1):
                if total_units % u == 0:
                    best = u
                    break
        tq = unit * best
    else:
        # "wrap" km mode: pad b to a 128 multiple; tiles subdivide one b period.
        wrap = True
        bq = _round_up(b, 128)
        d = bq // 128
        t = 1
        for u in range(1, min(d, max(1, lane_cap // 128)) + 1):
            if d % u == 0:
                t = u
        tq = 128 * t
        gp = g0
        qp = gp * bq
    return _Plan(B=b, NS=ns, Bq=bq, Gp=gp, Qp=qp, TQ=tq, wrap=wrap, n_steps=qp // tq)


def _lane_pattern(x_nv_b, plan, pad_value):
    """[NV, B] -> [NV, Qp] with b = q % Bq (padded batch columns get pad_value)."""
    if plan.Bq > plan.B:
        pad = jnp.full((x_nv_b.shape[0], plan.Bq - plan.B), pad_value, x_nv_b.dtype)
        x_nv_b = jnp.concatenate([x_nv_b, pad], axis=1)
    return jnp.tile(x_nv_b, (1, plan.Gp))


def _km_kernel_input(kappa_mu, plan):
    """kappa_mu [B,NV,M] -> [M, NV, 1, TQ] (tile mode) or [M, NV, 1, Bq] (wrap mode)."""
    b, nv, m = kappa_mu.shape
    km_t = jnp.transpose(kappa_mu, (2, 1, 0)).astype(jnp.float32)       # [M, NV, B]
    if plan.Bq > b:        # wrap mode: pad batch columns with unit e1 vectors
        pad = jnp.zeros((m, nv, plan.Bq - b), jnp.float32).at[0].set(1.0)
        km_t = jnp.concatenate([km_t, pad], axis=-1)                     # [M, NV, Bq]
    if not plan.wrap:      # tile mode: replicate to exactly one lane tile
        km_t = jnp.tile(km_t, (1, 1, plan.TQ // plan.Bq))                # [M, NV, TQ]
    return km_t[:, :, None, :]


def _vmf_pallas(km_k, w, v, plan, m, nv):
    """km_k [M,NV,1,*], w [1,NV,8,Qp], v [M-1,NV,8,Qp] -> z [M,NV,8,Qp], lp [8,Qp]."""
    tq, qp = plan.TQ, plan.Qp
    n_per = km_k.shape[-1] // tq          # 1 in tile mode, Bq//TQ in wrap mode
    if n_per == 1:
        km_map = lambda i: (0, 0, 0, 0)   # constant block index -> fetched once
    else:
        km_map = lambda i: (0, 0, 0, i % n_per)

    kern = partial(_vmf_forward_kernel, m=m)
    return pl.pallas_call(
        kern,
        out_shape=(
            jax.ShapeDtypeStruct((m, nv, 8, qp), km_k.dtype),
            jax.ShapeDtypeStruct((8, qp), jnp.float32),
        ),
        grid=(qp // tq,),
        in_specs=[
            pl.BlockSpec((m, nv, 1, tq), km_map),
            pl.BlockSpec((1, nv, 8, tq), lambda i: (0, 0, 0, i)),
            pl.BlockSpec((m - 1, nv, 8, tq), lambda i: (0, 0, 0, i)),
        ],
        out_specs=(
            pl.BlockSpec((m, nv, 8, tq), lambda i: (0, 0, 0, i)),
            pl.BlockSpec((8, tq), lambda i: (0, i)),
        ),
        compiler_params=pltpu.CompilerParams(
            dimension_semantics=("parallel",),   # lane tiles are independent
        ),
    )(km_k, w, v)


def _unpack_outputs(z_t, lp_t, plan, b, ns, nv, m):
    """Kernel layout -> (samples [B,NS,NV*M], log_prob [B,NS]); one transpose each."""
    z5 = z_t.reshape(m, nv, 8, plan.Gp, plan.Bq)
    samples = jnp.transpose(z5, (4, 3, 2, 1, 0)).reshape(plan.Bq, plan.Gp * 8, nv * m)
    lp = jnp.transpose(lp_t.reshape(8, plan.Gp, plan.Bq), (2, 1, 0))
    lp = lp.reshape(plan.Bq, plan.Gp * 8)
    return samples[:b, :ns], lp[:b, :ns]


# ---------------------------------------------------------------------------
# Plain-JAX glue: vMF pre-rotation sampling (rejection sampler for w)
# ---------------------------------------------------------------------------
def _sample_w_rejection(key, scale_slot, m, n_iters=64):
    """Rejection sampler for the vMF w-marginal (Ulrich/Wood), masked accepts."""
    shape = scale_slot.shape
    k = jnp.maximum(scale_slot.astype(jnp.float32), 1e-6)

    c = jnp.sqrt(4.0 * k * k + (m - 1) ** 2)
    b_true = (-2.0 * k + c) / (m - 1)
    b_app = (m - 1) / (4.0 * k)
    s = jnp.clip(k - 10.0, 0.0, 1.0)           # smooth blend, as in hyperspherical-vae
    b = b_app * s + b_true * (1.0 - s)
    a = (m - 1 + 2.0 * k + c) / 4.0
    d = (4.0 * a * b) / (1.0 + b) - (m - 1) * math.log(m - 1.0)

    def body(_, carry):
        w, accepted, kkey = carry
        kkey, k1, k2 = jax.random.split(kkey, 3)
        e_ = jax.random.beta(k1, (m - 1) / 2.0, (m - 1) / 2.0, shape)
        u = jax.random.uniform(k2, shape, minval=1e-20, maxval=1.0 - 1e-20)
        w_ = (1.0 - (1.0 + b) * e_) / (1.0 - (1.0 - b) * e_)
        t = (2.0 * a * b) / (1.0 - (1.0 - b) * e_)
        accept = ((m - 1.0) * jnp.log(t) - t + d) > jnp.log(u)
        newly = jnp.logical_and(accept, jnp.logical_not(accepted))
        w = jnp.where(newly, w_, w)
        accepted = jnp.logical_or(accepted, accept)
        return (w, accepted, kkey)

    # TODO(synk): torch loops until all accepted; we use a fixed iteration budget.
    w0 = jnp.zeros(shape, jnp.float32)
    acc0 = jnp.zeros(shape, bool)
    w, _, _ = jax.lax.fori_loop(0, n_iters, body, (w0, acc0, key))
    return w


def _draw_parts(key, kappa_mu, m, plan):
    """Draw w (rejection) and Gaussian tangential v directly in kernel layout."""
    nv = kappa_mu.shape[1]
    scale = jnp.linalg.norm(kappa_mu, axis=-1).astype(jnp.float32)       # [B, NV]
    scale_lane = _lane_pattern(scale.T, plan, 1.0)                       # [NV, Qp]
    scale_slot = jnp.broadcast_to(scale_lane[None, :, None, :], (1, nv, 8, plan.Qp))
    kw, kv = jax.random.split(key)
    w = _sample_w_rejection(kw, scale_slot, m)                           # [1, NV, 8, Qp]
    v = jax.random.normal(kv, (m - 1, nv, 8, plan.Qp), jnp.float32)
    return w, v


# ---------------------------------------------------------------------------
# Forward pass matching VmfProductPosterior.forward semantics
# ---------------------------------------------------------------------------
def vmf_product_posterior_forward(kappa_mu, key, n_samples=1, n_vmfs=5, vmf_dim=4,
                                  lane_cap=1024):
    assert kappa_mu.ndim == 3, f"len({kappa_mu.shape}) != 3"
    b_, nv, m = kappa_mu.shape
    assert nv == n_vmfs and m == vmf_dim + 1
    assert m % 2 == 1 and m >= 3, "only odd vmf_dim+1 (half-integer Bessel order)"
    # TODO(synk): `samples=` passthrough (log_prob of externally supplied samples, no
    # Householder rotation of new draws) and kld() are not wired into the kernel.

    plan = _plan_layout(n_samples, b_, lane_cap)
    w, v = _draw_parts(key, kappa_mu, m, plan)
    km_k = _km_kernel_input(kappa_mu, plan)
    z_t, lp_t = _vmf_pallas(km_k, w, v, plan, m, nv)
    return _unpack_outputs(z_t, lp_t, plan, b_, n_samples, nv, m)


def _vmf_reference(km_k, w, v, plan, m):
    """Pure-JAX reference of the in-kernel math (exact divides) for validation."""
    recip = lambda a: 1.0 / a
    reps = plan.Qp // km_k.shape[-1]
    km_full = jnp.tile(km_k.astype(jnp.float32), (1, 1, 1, reps))        # [M,NV,1,Qp]
    x = _build_x(w.astype(jnp.float32), v.astype(jnp.float32), recip)
    return _vmf_math(km_full, x, m, recip)


# ---------------------------------------------------------------------------
# Self-test
# ---------------------------------------------------------------------------
def _run_case(name, b, ns, n_vmfs, vmf_dim, key, lane_cap=1024, small_kappa=False):
    m = vmf_dim + 1
    k_km, k_s = jax.random.split(key)
    kappa_mu = jax.random.normal(k_km, (b, n_vmfs, m), jnp.float32)
    if small_kappa:
        kappa_mu = kappa_mu.at[0].multiply(1e-3)   # exercise small-kappa Bessel branch

    samples, lp = vmf_product_posterior_forward(
        kappa_mu, k_s, n_samples=ns, n_vmfs=n_vmfs, vmf_dim=vmf_dim, lane_cap=lane_cap)
    jax.block_until_ready((samples, lp))
    assert samples.shape == (b, ns, n_vmfs * m), (name, samples.shape)
    assert lp.shape == (b, ns), (name, lp.shape)
    assert np.all(np.isfinite(np.asarray(samples))), name
    assert np.all(np.isfinite(np.asarray(lp))), name

    # Kernel vs pure-JAX reference on the SAME draws.
    plan = _plan_layout(ns, b, lane_cap)
    w, v = _draw_parts(k_s, kappa_mu, m, plan)
    km_k = _km_kernel_input(kappa_mu, plan)
    z_k, lp_k = _vmf_pallas(km_k, w, v, plan, m, n_vmfs)
    z_r, lp_r = _vmf_reference(km_k, w, v, plan, m)
    s_k, p_k = _unpack_outputs(z_k, lp_k, plan, b, ns, n_vmfs, m)
    s_r, p_r = _unpack_outputs(z_r, lp_r, plan, b, ns, n_vmfs, m)
    np.testing.assert_allclose(np.asarray(s_k), np.asarray(s_r), atol=1e-4, rtol=1e-4)
    np.testing.assert_allclose(np.asarray(p_k), np.asarray(p_r), atol=2e-3, rtol=2e-3)

    # Rotated samples must stay on the unit sphere per vMF component.
    norms = np.linalg.norm(np.asarray(s_k).reshape(b, ns, n_vmfs, m), axis=-1)
    np.testing.assert_allclose(norms, 1.0, atol=3e-4)


if __name__ == "__main__":
    root = jax.random.PRNGKey(0)
    keys = jax.random.split(root, 3)

    # (a) tiny/default shapes, small-kappa rows included, single lane tile.
    _run_case("small", b=2, ns=8, n_vmfs=5, vmf_dim=4, key=keys[0], small_kappa=True)
    # (b) tile-mode km dedup with a multi-step grid (km block reused across steps).
    _run_case("tile-multistep", b=128, ns=32, n_vmfs=5, vmf_dim=4, key=keys[1])
    # (c) wrap-mode km dedup (B wider than a lane tile), 4-step grid, padded B.
    _run_case("wrap-multistep", b=192, ns=16, n_vmfs=5, vmf_dim=4, key=keys[2],
              lane_cap=128)

    print("KERNEL_OK")
</pallas_src>

<mosaic_0001>
module attributes {stable_mosaic.version = 11 : i64} {
  func.func @_vmf_forward_kernel(%arg0: i32, %arg1: memref<5x5x1x128xf32, #tpu.memory_space<vmem>>, %arg2: memref<1x5x8x128xf32, #tpu.memory_space<vmem>>, %arg3: memref<4x5x8x128xf32, #tpu.memory_space<vmem>>, %arg4: memref<5x5x8x128xf32, #tpu.memory_space<vmem>>, %arg5: memref<8x128xf32, #tpu.memory_space<vmem>>) attributes {dimension_semantics = [#tpu.dimension_semantics<parallel>], iteration_bounds = array<i64: 1>, scalar_prefetch = 0 : i64, scratch_operands = 0 : i64, tpu.core_type = #tpu.core_type<tc>, window_params = [{pipeline_mode = #tpu.pipeline_mode<synchronous>, transform_indices = @transform_0, window_bounds = array<i64: 5, 5, 1, 128>}, {transform_indices = @transform_1, window_bounds = array<i64: 1, 5, 8, 128>}, {transform_indices = @transform_2, window_bounds = array<i64: 4, 5, 8, 128>}, {transform_indices = @transform_3, window_bounds = array<i64: 5, 5, 8, 128>}, {transform_indices = @transform_4, window_bounds = array<i64: 8, 128>}]} {
    %c0 = arith.constant 0 : index
    %c0_0 = arith.constant 0 : index
    %c0_1 = arith.constant 0 : index
    %c0_2 = arith.constant 0 : index
    %0 = vector.load %arg1[%c0, %c0_0, %c0_1, %c0_2] : memref<5x5x1x128xf32, #tpu.memory_space<vmem>>, vector<5x5x1x128xf32>
    %c0_3 = arith.constant 0 : index
    %c0_4 = arith.constant 0 : index
    %c0_5 = arith.constant 0 : index
    %c0_6 = arith.constant 0 : index
    %1 = vector.load %arg2[%c0_3, %c0_4, %c0_5, %c0_6] : memref<1x5x8x128xf32, #tpu.memory_space<vmem>>, vector<1x5x8x128xf32>
    %c0_7 = arith.constant 0 : index
    %c0_8 = arith.constant 0 : index
    %c0_9 = arith.constant 0 : index
    %c0_10 = arith.constant 0 : index
    %2 = vector.load %arg3[%c0_7, %c0_8, %c0_9, %c0_10] : memref<4x5x8x128xf32, #tpu.memory_space<vmem>>, vector<4x5x8x128xf32>
    %3 = arith.mulf %2, %2 : vector<4x5x8x128xf32>
    %cst = arith.constant dense<0.000000e+00> : vector<5x8x128xf32>
    %4 = vector.multi_reduction <add>, %3, %cst [0] : vector<4x5x8x128xf32> to vector<5x8x128xf32>
    %5 = vector.shape_cast %4 : vector<5x8x128xf32> to vector<1x5x8x128xf32>
    %cst_11 = arith.constant 9.99999968E-21 : f32
    %6 = vector.broadcast %cst_11 : f32 to vector<1x5x8x128xf32>
    %7 = arith.maximumf %5, %6 : vector<1x5x8x128xf32>
    %8 = math.sqrt %7 : vector<1x5x8x128xf32>
    %9 = tpu.reciprocal %8 {approx = true} : vector<1x5x8x128xf32> -> vector<1x5x8x128xf32>
    %10 = arith.mulf %8, %9 : vector<1x5x8x128xf32>
    %cst_12 = arith.constant 2.000000e+00 : f32
    %11 = vector.broadcast %cst_12 : f32 to vector<1x5x8x128xf32>
    %12 = arith.subf %11, %10 : vector<1x5x8x128xf32>
    %13 = arith.mulf %9, %12 : vector<1x5x8x128xf32>
    %14 = vector.broadcast %13 : vector<1x5x8x128xf32> to vector<4x5x8x128xf32>
    %15 = arith.mulf %2, %14 : vector<4x5x8x128xf32>
    %16 = arith.mulf %1, %1 : vector<1x5x8x128xf32>
    %cst_13 = arith.constant 1.000000e+00 : f32
    %17 = vector.broadcast %cst_13 : f32 to vector<1x5x8x128xf32>
    %18 = arith.subf %17, %16 : vector<1x5x8x128xf32>
    %cst_14 = arith.constant 1.000000e-10 : f32
    %19 = vector.broadcast %cst_14 : f32 to vector<1x5x8x128xf32>
    %20 = arith.maximumf %18, %19 : vector<1x5x8x128xf32>
    %21 = math.sqrt %20 : vector<1x5x8x128xf32>
    %22 = vector.broadcast %21 : vector<1x5x8x128xf32> to vector<4x5x8x128xf32>
    %23 = arith.mulf %22, %15 : vector<4x5x8x128xf32>
    %24 = tpu.concatenate %1, %23 in 0 : vector<1x5x8x128xf32>, vector<4x5x8x128xf32> -> vector<5x5x8x128xf32>
    %25 = arith.mulf %0, %0 : vector<5x5x1x128xf32>
    %cst_15 = arith.constant dense<0.000000e+00> : vector<5x1x128xf32>
    %26 = vector.multi_reduction <add>, %25, %cst_15 [0] : vector<5x5x1x128xf32> to vector<5x1x128xf32>
    %27 = vector.shape_cast %26 : vector<5x1x128xf32> to vector<1x5x1x128xf32>
    %28 = math.sqrt %27 : vector<1x5x1x128xf32>
    %cst_16 = arith.constant 9.99999974E-6 : f32
    %29 = vector.broadcast %cst_16 : f32 to vector<1x5x1x128xf32>
    %30 = arith.addf %28, %29 : vector<1x5x1x128xf32>
    %31 = tpu.reciprocal %30 {approx = true} : vector<1x5x1x128xf32> -> vector<1x5x1x128xf32>
    %32 = arith.mulf %30, %31 : vector<1x5x1x128xf32>
    %cst_17 = arith.constant 2.000000e+00 : f32
    %33 = vector.broadcast %cst_17 : f32 to vector<1x5x1x128xf32>
    %34 = arith.subf %33, %32 : vector<1x5x1x128xf32>
    %35 = arith.mulf %31, %34 : vector<1x5x1x128xf32>
    %36 = vector.broadcast %35 : vector<1x5x1x128xf32> to vector<5x5x1x128xf32>
    %37 = arith.mulf %0, %36 : vector<5x5x1x128xf32>
    %38 = vector.extract_strided_slice %37 {offsets = [0, 0, 0, 0], sizes = [1, 5, 1, 128], strides = [1, 1, 1, 1]} : vector<5x5x1x128xf32> to vector<1x5x1x128xf32>
    %cst_18 = arith.constant 1.000000e+00 : f32
    %39 = vector.broadcast %cst_18 : f32 to vector<1x5x1x128xf32>
    %40 = arith.subf %39, %38 : vector<1x5x1x128xf32>
    %41 = vector.extract_strided_slice %37 {offsets = [1, 0, 0, 0], sizes = [4, 5, 1, 128], strides = [1, 1, 1, 1]} : vector<5x5x1x128xf32> to vector<4x5x1x128xf32>
    %cst_19 = arith.constant 0.000000e+00 : f32
    %42 = vector.broadcast %cst_19 : f32 to vector<4x5x1x128xf32>
    %43 = arith.subf %42, %41 : vector<4x5x1x128xf32>
    %44 = tpu.concatenate %40, %43 in 0 : vector<1x5x1x128xf32>, vector<4x5x1x128xf32> -> vector<5x5x1x128xf32>
    %45 = arith.mulf %44, %44 : vector<5x5x1x128xf32>
    %cst_20 = arith.constant dense<0.000000e+00> : vector<5x1x128xf32>
    %46 = vector.multi_reduction <add>, %45, %cst_20 [0] : vector<5x5x1x128xf32> to vector<5x1x128xf32>
    %47 = vector.shape_cast %46 : vector<5x1x128xf32> to vector<1x5x1x128xf32>
    %48 = math.sqrt %47 : vector<1x5x1x128xf32>
    %cst_21 = arith.constant 9.99999974E-6 : f32
    %49 = vector.broadcast %cst_21 : f32 to vector<1x5x1x128xf32>
    %50 = arith.addf %48, %49 : vector<1x5x1x128xf32>
    %51 = tpu.reciprocal %50 {approx = true} : vector<1x5x1x128xf32> -> vector<1x5x1x128xf32>
    %52 = arith.mulf %50, %51 : vector<1x5x1x128xf32>
    %cst_22 = arith.constant 2.000000e+00 : f32
    %53 = vector.broadcast %cst_22 : f32 to vector<1x5x1x128xf32>
    %54 = arith.subf %53, %52 : vector<1x5x1x128xf32>
    %55 = arith.mulf %51, %54 : vector<1x5x1x128xf32>
    %56 = vector.broadcast %55 : vector<1x5x1x128xf32> to vector<5x5x1x128xf32>
    %57 = arith.mulf %44, %56 : vector<5x5x1x128xf32>
    %58 = vector.broadcast %57 : vector<5x5x1x128xf32> to vector<5x5x8x128xf32>
    %59 = arith.mulf %24, %58 : vector<5x5x8x128xf32>
    %cst_23 = arith.constant dense<0.000000e+00> : vector<5x8x128xf32>
    %60 = vector.multi_reduction <add>, %59, %cst_23 [0] : vector<5x5x8x128xf32> to vector<5x8x128xf32>
    %61 = vector.shape_cast %60 : vector<5x8x128xf32> to vector<1x5x8x128xf32>
    %cst_24 = arith.constant 2.000000e+00 : f32
    %62 = vector.broadcast %cst_24 : f32 to vector<1x5x8x128xf32>
    %63 = arith.mulf %62, %61 : vector<1x5x8x128xf32>
    %64 = vector.broadcast %63 : vector<1x5x8x128xf32> to vector<5x5x8x128xf32>
    %65 = vector.broadcast %57 : vector<5x5x1x128xf32> to vector<5x5x8x128xf32>
    %66 = arith.mulf %64, %65 : vector<5x5x8x128xf32>
    %67 = arith.subf %24, %66 : vector<5x5x8x128xf32>
    %cst_25 = arith.constant 9.99999997E-7 : f32
    %68 = vector.broadcast %cst_25 : f32 to vector<1x5x1x128xf32>
    %69 = arith.maximumf %28, %68 : vector<1x5x1x128xf32>
    %70 = vector.broadcast %37 : vector<5x5x1x128xf32> to vector<5x5x8x128xf32>
    %71 = arith.mulf %70, %67 : vector<5x5x8x128xf32>
    %cst_26 = arith.constant dense<0.000000e+00> : vector<5x8x128xf32>
    %72 = vector.multi_reduction <add>, %71, %cst_26 [0] : vector<5x5x8x128xf32> to vector<5x8x128xf32>
    %73 = vector.shape_cast %72 : vector<5x8x128xf32> to vector<1x5x8x128xf32>
    %74 = vector.broadcast %28 : vector<1x5x1x128xf32> to vector<1x5x8x128xf32>
    %75 = arith.mulf %74, %73 : vector<1x5x8x128xf32>
    %76 = tpu.reciprocal %69 {approx = true} : vector<1x5x1x128xf32> -> vector<1x5x1x128xf32>
    %77 = arith.mulf %69, %76 : vector<1x5x1x128xf32>
    %cst_27 = arith.constant 2.000000e+00 : f32
    %78 = vector.broadcast %cst_27 : f32 to vector<1x5x1x128xf32>
    %79 = arith.subf %78, %77 : vector<1x5x1x128xf32>
    %80 = arith.mulf %76, %79 : vector<1x5x1x128xf32>
    %cst_28 = arith.constant 0.636619746 : f32
    %81 = vector.broadcast %cst_28 : f32 to vector<1x5x1x128xf32>
    %82 = arith.mulf %81, %80 : vector<1x5x1x128xf32>
    %83 = math.sqrt %82 : vector<1x5x1x128xf32>
    %cst_29 = arith.constant -2.000000e+00 : f32
    %84 = vector.broadcast %cst_29 : f32 to vector<1x5x1x128xf32>
    %85 = arith.mulf %84, %69 : vector<1x5x1x128xf32>
    %86 = math.exp %85 : vector<1x5x1x128xf32>
    %cst_30 = arith.constant 5.000000e-01 : f32
    %87 = vector.broadcast %cst_30 : f32 to vector<1x5x1x128xf32>
    %88 = arith.mulf %83, %87 : vector<1x5x1x128xf32>
    %cst_31 = arith.constant 1.000000e+00 : f32
    %89 = vector.broadcast %cst_31 : f32 to vector<1x5x1x128xf32>
    %90 = arith.addf %89, %86 : vector<1x5x1x128xf32>
    %91 = arith.mulf %88, %90 : vector<1x5x1x128xf32>
    %cst_32 = arith.constant 5.000000e-01 : f32
    %92 = vector.broadcast %cst_32 : f32 to vector<1x5x1x128xf32>
    %93 = arith.mulf %83, %92 : vector<1x5x1x128xf32>
    %cst_33 = arith.constant 1.000000e+00 : f32
    %94 = vector.broadcast %cst_33 : f32 to vector<1x5x1x128xf32>
    %95 = arith.subf %94, %86 : vector<1x5x1x128xf32>
    %96 = arith.mulf %93, %95 : vector<1x5x1x128xf32>
    %cst_34 = arith.constant 1.000000e+00 : f32
    %97 = vector.broadcast %cst_34 : f32 to vector<1x5x1x128xf32>
    %98 = arith.mulf %97, %80 : vector<1x5x1x128xf32>
    %99 = arith.mulf %98, %96 : vector<1x5x1x128xf32>
    %100 = arith.subf %91, %99 : vector<1x5x1x128xf32>
    %cst_35 = arith.constant 9.99999991E-38 : f32
    %101 = vector.broadcast %cst_35 : f32 to vector<1x5x1x128xf32>
    %102 = arith.maximumf %100, %101 : vector<1x5x1x128xf32>
    %103 = math.log %102 : vector<1x5x1x128xf32>
    %cst_36 = arith.constant 2.500000e-01 : f32
    %104 = vector.broadcast %cst_36 : f32 to vector<1x5x1x128xf32>
    %105 = arith.mulf %104, %69 : vector<1x5x1x128xf32>
    %106 = arith.mulf %105, %69 : vector<1x5x1x128xf32>
    %cst_37 = arith.constant 5.000000e-01 : f32
    %107 = vector.broadcast %cst_37 : f32 to vector<1x5x1x128xf32>
    %108 = arith.mulf %107, %69 : vector<1x5x1x128xf32>
    %109 = math.log %108 : vector<1x5x1x128xf32>
    %cst_38 = arith.constant 1.500000e+00 : f32
    %110 = vector.broadcast %cst_38 : f32 to vector<1x5x1x128xf32>
    %111 = arith.mulf %110, %109 : vector<1x5x1x128xf32>
    %112 = arith.subf %111, %69 : vector<1x5x1x128xf32>
    %cst_39 = arith.constant 0.0031841388 : f32
    %113 = vector.broadcast %cst_39 : f32 to vector<1x5x1x128xf32>
    %114 = arith.mulf %106, %113 : vector<1x5x1x128xf32>
    %cst_40 = arith.constant 0.0429858714 : f32
    %115 = vector.broadcast %cst_40 : f32 to vector<1x5x1x128xf32>
    %116 = arith.addf %115, %114 : vector<1x5x1x128xf32>
    %117 = arith.mulf %106, %116 : vector<1x5x1x128xf32>
    %cst_41 = arith.constant 0.300901115 : f32
    %118 = vector.broadcast %cst_41 : f32 to vector<1x5x1x128xf32>
    %119 = arith.addf %118, %117 : vector<1x5x1x128xf32>
    %120 = arith.mulf %106, %119 : vector<1x5x1x128xf32>
    %cst_42 = arith.constant 0.752252757 : f32
    %121 = vector.broadcast %cst_42 : f32 to vector<1x5x1x128xf32>
    %122 = arith.addf %121, %120 : vector<1x5x1x128xf32>
    %123 = math.log %122 : vector<1x5x1x128xf32>
    %124 = arith.addf %112, %123 : vector<1x5x1x128xf32>
    %cst_43 = arith.constant 5.000000e-01 : f32
    %125 = vector.broadcast %cst_43 : f32 to vector<1x5x1x128xf32>
    %126 = arith.cmpf olt, %69, %125 : vector<1x5x1x128xf32>
    %127 = arith.select %126, %124, %103 : vector<1x5x1x128xi1>, vector<1x5x1x128xf32>
    %128 = math.log %69 : vector<1x5x1x128xf32>
    %cst_44 = arith.constant 1.500000e+00 : f32
    %129 = vector.broadcast %cst_44 : f32 to vector<1x5x1x128xf32>
    %130 = arith.mulf %129, %128 : vector<1x5x1x128xf32>
    %cst_45 = arith.constant 4.59469271 : f32
    %131 = vector.broadcast %cst_45 : f32 to vector<1x5x1x128xf32>
    %132 = arith.subf %130, %131 : vector<1x5x1x128xf32>
    %133 = arith.addf %69, %127 : vector<1x5x1x128xf32>
    %134 = arith.subf %132, %133 : vector<1x5x1x128xf32>
    %135 = vector.broadcast %134 : vector<1x5x1x128xf32> to vector<1x5x8x128xf32>
    %136 = arith.addf %75, %135 : vector<1x5x8x128xf32>
    %137 = vector.shape_cast %136 : vector<1x5x8x128xf32> to vector<5x8x128xf32>
    %cst_46 = arith.constant dense<0.000000e+00> : vector<8x128xf32>
    %138 = vector.multi_reduction <add>, %137, %cst_46 [0] : vector<5x8x128xf32> to vector<8x128xf32>
    %c0_47 = arith.constant 0 : index
    %c0_48 = arith.constant 0 : index
    %c0_49 = arith.constant 0 : index
    %c0_50 = arith.constant 0 : index
    %139 = vector.load %arg4[%c0_47, %c0_48, %c0_49, %c0_50] : memref<5x5x8x128xf32, #tpu.memory_space<vmem>>, vector<5x5x8x128xf32>
    tpu.vector_store %arg4[%c0_47, %c0_48, %c0_49, %c0_50], %67 {strides = array<i32>} : memref<5x5x8x128xf32, #tpu.memory_space<vmem>>, vector<5x5x8x128xf32>,
    %c0_51 = arith.constant 0 : index
    %c0_52 = arith.constant 0 : index
    %140 = vector.load %arg5[%c0_51, %c0_52] : memref<8x128xf32, #tpu.memory_space<vmem>>, vector<8x128xf32>
    tpu.vector_store %arg5[%c0_51, %c0_52], %138 {strides = array<i32>} : memref<8x128xf32, #tpu.memory_space<vmem>>, vector<8x128xf32>,
    return
  }
  func.func @transform_0(%arg0: i32) -> (i32, i32, i32, i32) {
    %c0_i32 = arith.constant 0 : i32
    %c0_i32_0 = arith.constant 0 : i32
    %c0_i32_1 = arith.constant 0 : i32
    %c0_i32_2 = arith.constant 0 : i32
    %c0_i32_3 = arith.constant 0 : i32
    return %c0_i32, %c0_i32_0, %c0_i32_1, %c0_i32_2 : i32, i32, i32, i32
  }
  func.func @transform_1(%arg0: i32) -> (i32, i32, i32, i32) {
    %c0_i32 = arith.constant 0 : i32
    %c0_i32_0 = arith.constant 0 : i32
    %c0_i32_1 = arith.constant 0 : i32
    %c0_i32_2 = arith.constant 0 : i32
    return %c0_i32, %c0_i32_0, %c0_i32_1, %arg0 : i32, i32, i32, i32
  }
  func.func @transform_2(%arg0: i32) -> (i32, i32, i32, i32) {
    %c0_i32 = arith.constant 0 : i32
    %c0_i32_0 = arith.constant 0 : i32
    %c0_i32_1 = arith.constant 0 : i32
    %c0_i32_2 = arith.constant 0 : i32
    return %c0_i32, %c0_i32_0, %c0_i32_1, %arg0 : i32, i32, i32, i32
  }
  func.func @transform_3(%arg0: i32) -> (i32, i32, i32, i32) {
    %c0_i32 = arith.constant 0 : i32
    %c0_i32_0 = arith.constant 0 : i32
    %c0_i32_1 = arith.constant 0 : i32
    %c0_i32_2 = arith.constant 0 : i32
    return %c0_i32, %c0_i32_0, %c0_i32_1, %arg0 : i32, i32, i32, i32
  }
  func.func @transform_4(%arg0: i32) -> (i32, i32) {
    %c0_i32 = arith.constant 0 : i32
    %c0_i32_0 = arith.constant 0 : i32
    return %c0_i32, %arg0 : i32, i32
  }
}

</mosaic_0001>

<llo_original>
// kernel: tpu_custom_call.1
$region0: #{tpu_custom_call.1}
  #allocation0 [shape = 'u32[]', space=smem, size = 0x4, offset = 0x4, fixed_abs, tag = 'smem constant byte address 0x4 - core index']
  #allocation1 [shape = 'u32[144,128]{1,0:T(1,128)}', space=vmem, size = 0x12000, scoped, tag = 'internal scratch']
  %s0 = inlined_call_operand.hbm [shape: f32[5,5,1,128], index: 0, kind: input, shape index: {}]
  %s1 = inlined_call_operand.hbm [shape: f32[1,5,8,128], index: 1, kind: input, shape index: {}]
  %s2 = inlined_call_operand.hbm [shape: f32[4,5,8,128], index: 2, kind: input, shape index: {}]
  %s3 = inlined_call_operand.hbm [shape: f32[5,5,8,128], index: 3, kind: output, shape index: {0}]
  %s4 = inlined_call_operand.hbm [shape: f32[8,128], index: 4, kind: output, shape index: {1}]
  %5 = xla_tuple %s3, %s4
  %s6 = sld [smem:[#allocation0]]
  $region42: #{tpu_custom_call.1} parent=0
    _
  %s8 = ssub.s32 1, %s6
  %s9 = scalar_select 0, %s8, %s6
  $region1: #{tpu_custom_call.1} parent=0
    #allocation2 [shape = 'u8[12800]{0}', space=vmem, size = 0x3400, scoped, tag = 'input window, operand 0, single buffered']
    #allocation3 [shape = 's32[1]{0}', space=sflag, size = 0x4, scoped, tag = 'scoped memory for tpu_custom_call.1']
    #allocation4 [shape = 's32[1]{0}', space=sflag, size = 0x4, scoped, tag = 'scoped memory for tpu_custom_call.1']
    #allocation5 [shape = 'u8[20480]{0}', space=vmem, size = 0x5000, scoped, tag = 'input window, operand 1, single buffered']
    #allocation6 [shape = 's32[1]{0}', space=sflag, size = 0x4, scoped, tag = 'scoped memory for tpu_custom_call.1']
    #allocation7 [shape = 'u8[81920]{0}', space=vmem, size = 0x14000, scoped, tag = 'input window, operand 2, single buffered']
    #allocation8 [shape = 'u8[102400]{0}', space=vmem, size = 0x19000, scoped, tag = 'output window, operand 0, single buffered']
    #allocation9 [shape = 'u8[4096]{0}', space=vmem, size = 0x1000, scoped, tag = 'output window, operand 1, single buffered']
    #allocation10 [shape = 's32[1]{0}', space=sflag, size = 0x4, scoped, tag = 'scoped memory for tpu_custom_call.1']
    %10 = vsyncpa [#allocation3], 0
    %11 = vsyncpa [#allocation6], 0
    %12 = vsyncpa [#allocation4], 0
    %13 = vsyncpa [#allocation10], 0
    // Predicated region
    $region2: #{tpu_custom_call.1} parent=1 // pred_check
      _
    $region3: #{tpu_custom_call.1} parent=1 // pred_check_branch
      %15 = sbr.rel (0) target = $region5
    $region4: #{tpu_custom_call.1} parent=1 // pred_region
      %s17 = ssub.s32 400, 400
      %18 = vsyncadd [#allocation3], %s17
      %s19 = sshll.u32 [#allocation2], 4
      %s20 = int_to_ptr.vmem [resolvable:$true] %s19
      %25 = dma.hbm_to_vmem [thread:$0]  %s0, 400, %s20, [#allocation3], 16, 16, 1
    $region5: #{tpu_custom_call.1} parent=1 // pred_fallthru
      _
    // Predicated region
    $region6: #{tpu_custom_call.1} parent=1 // pred_check
      _
    $region7: #{tpu_custom_call.1} parent=1 // pred_check_branch
      %27 = sbr.rel (0) target = $region9
    $region8: #{tpu_custom_call.1} parent=1 // pred_region
      %s29 = ssub.s32 640, 640
      %30 = vsyncadd [#allocation6], %s29
      %s31 = sshll.u32 [#allocation5], 4
      %s32 = int_to_ptr.vmem [resolvable:$true] %s31
      %37 = dma.hbm_to_vmem [thread:$0]  %s1, 640, %s32, [#allocation6], 128, 128, 8
    $region9: #{tpu_custom_call.1} parent=1 // pred_fallthru
      _
    // Predicated region
    $region10: #{tpu_custom_call.1} parent=1 // pred_check
      _
    $region11: #{tpu_custom_call.1} parent=1 // pred_check_branch
      %39 = sbr.rel (0) target = $region13
    $region12: #{tpu_custom_call.1} parent=1 // pred_region
      %s41 = ssub.s32 2560, 2560
      %42 = vsyncadd [#allocation6], %s41
      %s43 = sshll.u32 [#allocation7], 4
      %s44 = int_to_ptr.vmem [resolvable:$true] %s43
      %49 = dma.hbm_to_vmem [thread:$0]  %s2, 2560, %s44, [#allocation6], 128, 128, 8
    $region13: #{tpu_custom_call.1} parent=1 // pred_fallthru
      _
    // Predicated region
    $region14: #{tpu_custom_call.1} parent=1 // pred_check
      _
    $region15: #{tpu_custom_call.1} parent=1 // pred_check_branch
      %51 = sbr.rel (0) target = $region17
    $region16: #{tpu_custom_call.1} parent=1 // pred_region
      %52 = dma.done [#allocation3], 400
    $region17: #{tpu_custom_call.1} parent=1 // pred_fallthru
      _
    // Predicated region
    $region18: #{tpu_custom_call.1} parent=1 // pred_check
      _
    $region19: #{tpu_custom_call.1} parent=1 // pred_check_branch
      %54 = sbr.rel (0) target = $region21
    $region20: #{tpu_custom_call.1} parent=1 // pred_region
      %55 = dma.done [#allocation6], 640
    $region21: #{tpu_custom_call.1} parent=1 // pred_fallthru
      _
    // Predicated region
    $region22: #{tpu_custom_call.1} parent=1 // pred_check
      _
    $region23: #{tpu_custom_call.1} parent=1 // pred_check_branch
      %57 = sbr.rel (0) target = $region25
    $region24: #{tpu_custom_call.1} parent=1 // pred_region
      %58 = dma.done [#allocation6], 2560
    $region25: #{tpu_custom_call.1} parent=1 // pred_fallthru
      _
    %v59 = vld [vmem:[#allocation2] sm:$0x1]
    %v60 = vld [vmem:[#allocation2 + $0x1] sm:$0x1]
    %v61 = vld [vmem:[#allocation2 + $0x2] sm:$0x1]
    %v62 = vld [vmem:[#allocation2 + $0x3] sm:$0x1]
    %v63 = vld [vmem:[#allocation2 + $0x4] sm:$0x1]
    %v64 = vld [vmem:[#allocation2 + $0x5] sm:$0x1]
    %v65 = vld [vmem:[#allocation2 + $0x6] sm:$0x1]
    %v66 = vld [vmem:[#allocation2 + $0x7] sm:$0x1]
    %v67 = vld [vmem:[#allocation2 + $0x8] sm:$0x1]
    %v68 = vld [vmem:[#allocation2 + $0x9] sm:$0x1]
    %v69 = vld [vmem:[#allocation2 + $0xa] sm:$0x1]
    %v70 = vld [vmem:[#allocation2 + $0xb] sm:$0x1]
    %v71 = vld [vmem:[#allocation2 + $0xc] sm:$0x1]
    %v72 = vld [vmem:[#allocation2 + $0xd] sm:$0x1]
    %v73 = vld [vmem:[#allocation2 + $0xe] sm:$0x1]
    %v74 = vld [vmem:[#allocation2 + $0xf] sm:$0x1]
    %v75 = vld [vmem:[#allocation2 + $0x10] sm:$0x1]
    %v76 = vld [vmem:[#allocation2 + $0x11] sm:$0x1]
    %v77 = vld [vmem:[#allocation2 + $0x12] sm:$0x1]
    %v78 = vld [vmem:[#allocation2 + $0x13] sm:$0x1]
    %v79 = vld [vmem:[#allocation2 + $0x14] sm:$0x1]
    %v80 = vld [vmem:[#allocation2 + $0x15] sm:$0x1]
    %v81 = vld [vmem:[#allocation2 + $0x16] sm:$0x1]
    %v82 = vld [vmem:[#allocation2 + $0x17] sm:$0x1]
    %v83 = vld [vmem:[#allocation2 + $0x18] sm:$0x1]
    %v84 = vld [vmem:[#allocation5] sm:$0xff]
    %v85 = vld [vmem:[#allocation5 + $0x8] sm:$0xff]
    %v86 = vld [vmem:[#allocation5 + $0x10] sm:$0xff]
    %v87 = vld [vmem:[#allocation5 + $0x18] sm:$0xff]
    %v88 = vld [vmem:[#allocation5 + $0x20] sm:$0xff]
    %v89 = vld [vmem:[#allocation7] sm:$0xff]
    %v90 = vld [vmem:[#allocation7 + $0x8] sm:$0xff]
    %v91 = vld [vmem:[#allocation7 + $0x10] sm:$0xff]
    %v92 = vld [vmem:[#allocation7 + $0x18] sm:$0xff]
    %v93 = vld [vmem:[#allocation7 + $0x20] sm:$0xff]
    %v94 = vld [vmem:[#allocation7 + $0x28] sm:$0xff]
    %v95 = vld [vmem:[#allocation7 + $0x30] sm:$0xff]
    %v96 = vld [vmem:[#allocation7 + $0x38] sm:$0xff]
    %v97 = vld [vmem:[#allocation7 + $0x40] sm:$0xff]
    %v98 = vld [vmem:[#allocation7 + $0x48] sm:$0xff]
    %v99 = vld [vmem:[#allocation7 + $0x50] sm:$0xff]
    %v100 = vld [vmem:[#allocation7 + $0x58] sm:$0xff]
    %v101 = vld [vmem:[#allocation7 + $0x60] sm:$0xff]
    %v102 = vld [vmem:[#allocation7 + $0x68] sm:$0xff]
    %v103 = vld [vmem:[#allocation7 + $0x70] sm:$0xff]
    %v104 = vld [vmem:[#allocation7 + $0x78] sm:$0xff]
    %v105 = vld [vmem:[#allocation7 + $0x80] sm:$0xff]
    %v106 = vld [vmem:[#allocation7 + $0x88] sm:$0xff]
    %v107 = vld [vmem:[#allocation7 + $0x90] sm:$0xff]
    %v108 = vld [vmem:[#allocation7 + $0x98] sm:$0xff]
    %v109 = vmul.f32 %v89, %v89
    %v110 = vmul.f32 %v90, %v90
    %v111 = vmul.f32 %v91, %v91
    %v112 = vmul.f32 %v92, %v92
    %v113 = vmul.f32 %v93, %v93
    %v114 = vmul.f32 %v94, %v94
    %v115 = vmul.f32 %v95, %v95
    %v116 = vmul.f32 %v96, %v96
    %v117 = vmul.f32 %v97, %v97
    %v118 = vmul.f32 %v98, %v98
    %v119 = vmul.f32 %v99, %v99
    %v120 = vmul.f32 %v100, %v100
    %v121 = vmul.f32 %v101, %v101
    %v122 = vmul.f32 %v102, %v102
    %v123 = vmul.f32 %v103, %v103
    %v124 = vmul.f32 %v104, %v104
    %v125 = vmul.f32 %v105, %v105
    %v126 = vmul.f32 %v106, %v106
    %v127 = vmul.f32 %v107, %v107
    %v128 = vmul.f32 %v108, %v108
    %v129 = vadd.f32 %v109, %v114
    %v130 = vadd.f32 %v129, %v119
    %v131 = vadd.f32 %v130, %v124
    %v132 = vadd.f32 %v110, %v115
    %v133 = vadd.f32 %v132, %v120
    %v134 = vadd.f32 %v133, %v125
    %v135 = vadd.f32 %v111, %v116
    %v136 = vadd.f32 %v135, %v121
    %v137 = vadd.f32 %v136, %v126
    %v138 = vadd.f32 %v112, %v117
    %v139 = vadd.f32 %v138, %v122
    %v140 = vadd.f32 %v139, %v127
    %v141 = vadd.f32 %v113, %v118
    %v142 = vadd.f32 %v141, %v123
    %v143 = vadd.f32 %v142, %v128
    %v144 = vmax.f32 %v131, 1e-20
    %v145 = vmax.f32 %v134, 1e-20
    %v146 = vmax.f32 %v137, 1e-20
    %v147 = vmax.f32 %v140, 1e-20
    %v148 = vmax.f32 %v143, 1e-20
    %v149 = vrsqrt.pop %v144
    %v150 = vmul.f32 %v144, %v149
    %vm151 = vcmp.eq.f32.partialorder %v144, inf
    %v152 = vsel %vm151, %v144, %v150
    %vm153 = vcmp.eq.f32.partialorder %v144, 0.0
    %v154 = vand.u32 %v144, 2147483648
    %v155 = vsel %vm153, %v154, %v152
    %v156 = vrsqrt.pop %v145
    %v157 = vmul.f32 %v145, %v156
    %vm158 = vcmp.eq.f32.partialorder %v145, inf
    %v159 = vsel %vm158, %v145, %v157
    %vm160 = vcmp.eq.f32.partialorder %v145, 0.0
    %v161 = vand.u32 %v145, 2147483648
    %v162 = vsel %vm160, %v161, %v159
    %v163 = vrsqrt.pop %v146
    %v164 = vmul.f32 %v146, %v163
    %vm165 = vcmp.eq.f32.partialorder %v146, inf
    %v166 = vsel %vm165, %v146, %v164
    %vm167 = vcmp.eq.f32.partialorder %v146, 0.0
    %v168 = vand.u32 %v146, 2147483648
    %v169 = vsel %vm167, %v168, %v166
    %v170 = vrsqrt.pop %v147
    %v171 = vmul.f32 %v147, %v170
    %vm172 = vcmp.eq.f32.partialorder %v147, inf
    %v173 = vsel %vm172, %v147, %v171
    %vm174 = vcmp.eq.f32.partialorder %v147, 0.0
    %v175 = vand.u32 %v147, 2147483648
    %v176 = vsel %vm174, %v175, %v173
    %v177 = vrsqrt.pop %v148
    %v178 = vmul.f32 %v148, %v177
    %vm179 = vcmp.eq.f32.partialorder %v148, inf
    %v180 = vsel %vm179, %v148, %v178
    %vm181 = vcmp.eq.f32.partialorder %v148, 0.0
    %v182 = vand.u32 %v148, 2147483648
    %v183 = vsel %vm181, %v182, %v180
    %v184 = vrcp.pop %v155
    %v185 = vrcp.pop %v162
    %v186 = vrcp.pop %v169
    %v187 = vrcp.pop %v176
    %v188 = vrcp.pop %v183
    %v189 = vmul.f32 %v155, %v184
    %v190 = vmul.f32 %v162, %v185
    %v191 = vmul.f32 %v169, %v186
    %v192 = vmul.f32 %v176, %v187
    %v193 = vmul.f32 %v183, %v188
    %v194 = vsub.f32 2.0, %v189
    %v195 = vsub.f32 2.0, %v190
    %v196 = vsub.f32 2.0, %v191
    %v197 = vsub.f32 2.0, %v192
    %v198 = vsub.f32 2.0, %v193
    %v199 = vmul.f32 %v184, %v194
    %v200 = vmul.f32 %v185, %v195
    %v201 = vmul.f32 %v186, %v196
    %v202 = vmul.f32 %v187, %v197
    %v203 = vmul.f32 %v188, %v198
    %v204 = vmul.f32 %v89, %v199
    %v205 = vmul.f32 %v90, %v200
    %v206 = vmul.f32 %v91, %v201
    %v207 = vmul.f32 %v92, %v202
    %v208 = vmul.f32 %v93, %v203
    %v209 = vmul.f32 %v94, %v199
    %v210 = vmul.f32 %v95, %v200
    %v211 = vmul.f32 %v96, %v201
    %v212 = vmul.f32 %v97, %v202
    %v213 = vmul.f32 %v98, %v203
    %v214 = vmul.f32 %v99, %v199
    %v215 = vmul.f32 %v100, %v200
    %v216 = vmul.f32 %v101, %v201
    %v217 = vmul.f32 %v102, %v202
    %v218 = vmul.f32 %v103, %v203
    %v219 = vmul.f32 %v104, %v199
    %v220 = vmul.f32 %v105, %v200
    %v221 = vmul.f32 %v106, %v201
    %v222 = vmul.f32 %v107, %v202
    %v223 = vmul.f32 %v108, %v203
    %v224 = vmul.f32 %v84, %v84
    %v225 = vmul.f32 %v85, %v85
    %v226 = vmul.f32 %v86, %v86
    %v227 = vmul.f32 %v87, %v87
    %v228 = vmul.f32 %v88, %v88
    %v229 = vsub.f32 1.0, %v224
    %v230 = vsub.f32 1.0, %v225
    %v231 = vsub.f32 1.0, %v226
    %v232 = vsub.f32 1.0, %v227
    %v233 = vsub.f32 1.0, %v228
    %v234 = vmax.f32 %v229, 1e-10
    %v235 = vmax.f32 %v230, 1e-10
    %v236 = vmax.f32 %v231, 1e-10
    %v237 = vmax.f32 %v232, 1e-10
    %v238 = vmax.f32 %v233, 1e-10
    %v239 = vrsqrt.pop %v234
    %v240 = vmul.f32 %v234, %v239
    %vm241 = vcmp.eq.f32.partialorder %v234, inf
    %v242 = vsel %vm241, %v234, %v240
    %vm243 = vcmp.eq.f32.partialorder %v234, 0.0
    %v244 = vand.u32 %v234, 2147483648
    %v245 = vsel %vm243, %v244, %v242
    %v246 = vrsqrt.pop %v235
    %v247 = vmul.f32 %v235, %v246
    %vm248 = vcmp.eq.f32.partialorder %v235, inf
    %v249 = vsel %vm248, %v235, %v247
    %vm250 = vcmp.eq.f32.partialorder %v235, 0.0
    %v251 = vand.u32 %v235, 2147483648
    %v252 = vsel %vm250, %v251, %v249
    %v253 = vrsqrt.pop %v236
    %v254 = vmul.f32 %v236, %v253
    %vm255 = vcmp.eq.f32.partialorder %v236, inf
    %v256 = vsel %vm255, %v236, %v254
    %vm257 = vcmp.eq.f32.partialorder %v236, 0.0
    %v258 = vand.u32 %v236, 2147483648
    %v259 = vsel %vm257, %v258, %v256
    %v260 = vrsqrt.pop %v237
    %v261 = vmul.f32 %v237, %v260
    %vm262 = vcmp.eq.f32.partialorder %v237, inf
    %v263 = vsel %vm262, %v237, %v261
    %vm264 = vcmp.eq.f32.partialorder %v237, 0.0
    %v265 = vand.u32 %v237, 2147483648
    %v266 = vsel %vm264, %v265, %v263
    %v267 = vrsqrt.pop %v238
    %v268 = vmul.f32 %v238, %v267
    %vm269 = vcmp.eq.f32.partialorder %v238, inf
    %v270 = vsel %vm269, %v238, %v268
    %vm271 = vcmp.eq.f32.partialorder %v238, 0.0
    %v272 = vand.u32 %v238, 2147483648
    %v273 = vsel %vm271, %v272, %v270
    %v274 = vmul.f32 %v245, %v204
    %v275 = vmul.f32 %v252, %v205
    %v276 = vmul.f32 %v259, %v206
    %v277 = vmul.f32 %v266, %v207
    %v278 = vmul.f32 %v273, %v208
    %v279 = vmul.f32 %v245, %v209
    %v280 = vmul.f32 %v252, %v210
    %v281 = vmul.f32 %v259, %v211
    %v282 = vmul.f32 %v266, %v212
    %v283 = vmul.f32 %v273, %v213
    %v284 = vmul.f32 %v245, %v214
    %v285 = vmul.f32 %v252, %v215
    %v286 = vmul.f32 %v259, %v216
    %v287 = vmul.f32 %v266, %v217
    %v288 = vmul.f32 %v273, %v218
    %v289 = vmul.f32 %v245, %v219
    %v290 = vmul.f32 %v252, %v220
    %v291 = vmul.f32 %v259, %v221
    %v292 = vmul.f32 %v266, %v222
    %v293 = vmul.f32 %v273, %v223
    %v294 = vmul.f32 %v59, %v59
    %v295 = vmul.f32 %v60, %v60
    %v296 = vmul.f32 %v61, %v61
    %v297 = vmul.f32 %v62, %v62
    %v298 = vmul.f32 %v63, %v63
    %v299 = vmul.f32 %v64, %v64
    %v300 = vmul.f32 %v65, %v65
    %v301 = vmul.f32 %v66, %v66
    %v302 = vmul.f32 %v67, %v67
    %v303 = vmul.f32 %v68, %v68
    %v304 = vmul.f32 %v69, %v69
    %v305 = vmul.f32 %v70, %v70
    %v306 = vmul.f32 %v71, %v71
    %v307 = vmul.f32 %v72, %v72
    %v308 = vmul.f32 %v73, %v73
    %v309 = vmul.f32 %v74, %v74
    %v310 = vmul.f32 %v75, %v75
    %v311 = vmul.f32 %v76, %v76
    %v312 = vmul.f32 %v77, %v77
    %v313 = vmul.f32 %v78, %v78
    %v314 = vmul.f32 %v79, %v79
    %v315 = vmul.f32 %v80, %v80
    %v316 = vmul.f32 %v81, %v81
    %v317 = vmul.f32 %v82, %v82
    %v318 = vmul.f32 %v83, %v83
    %vm319 = vcmask 1040384
    %v320 = vsel %vm319, %v294, 0.0
    %v321 = vsel %vm319, %v299, 0.0
    %v322 = vadd.f32 %v320, %v321
    %v323 = vsel %vm319, %v304, 0.0
    %v324 = vadd.f32 %v322, %v323
    %v325 = vsel %vm319, %v309, 0.0
    %v326 = vadd.f32 %v324, %v325
    %v327 = vsel %vm319, %v314, 0.0
    %v328 = vadd.f32 %v326, %v327
    %v329 = vsel %vm319, %v295, 0.0
    %v330 = vsel %vm319, %v300, 0.0
    %v331 = vadd.f32 %v329, %v330
    %v332 = vsel %vm319, %v305, 0.0
    %v333 = vadd.f32 %v331, %v332
    %v334 = vsel %vm319, %v310, 0.0
    %v335 = vadd.f32 %v333, %v334
    %v336 = vsel %vm319, %v315, 0.0
    %v337 = vadd.f32 %v335, %v336
    %v338 = vsel %vm319, %v296, 0.0
    %v339 = vsel %vm319, %v301, 0.0
    %v340 = vadd.f32 %v338, %v339
    %v341 = vsel %vm319, %v306, 0.0
    %v342 = vadd.f32 %v340, %v341
    %v343 = vsel %vm319, %v311, 0.0
    %v344 = vadd.f32 %v342, %v343
    %v345 = vsel %vm319, %v316, 0.0
    %v346 = vadd.f32 %v344, %v345
    %v347 = vsel %vm319, %v297, 0.0
    %v348 = vsel %vm319, %v302, 0.0
    %v349 = vadd.f32 %v347, %v348
    %v350 = vsel %vm319, %v307, 0.0
    %v351 = vadd.f32 %v349, %v350
    %v352 = vsel %vm319, %v312, 0.0
    %v353 = vadd.f32 %v351, %v352
    %v354 = vsel %vm319, %v317, 0.0
    %v355 = vadd.f32 %v353, %v354
    %v356 = vsel %vm319, %v298, 0.0
    %v357 = vsel %vm319, %v303, 0.0
    %v358 = vadd.f32 %v356, %v357
    %v359 = vsel %vm319, %v308, 0.0
    %v360 = vadd.f32 %v358, %v359
    %v361 = vsel %vm319, %v313, 0.0
    %v362 = vadd.f32 %v360, %v361
    %v363 = vsel %vm319, %v318, 0.0
    %v364 = vadd.f32 %v362, %v363
    %v365 = vrsqrt.pop %v328
    %v366 = vmul.f32 %v328, %v365
    %vm367 = vcmp.eq.f32.partialorder %v328, inf
    %v368 = vsel %vm367, %v328, %v366
    %vm369 = vcmp.eq.f32.partialorder %v328, 0.0
    %v370 = vand.u32 %v328, 2147483648
    %v371 = vsel %vm369, %v370, %v368
    %v372 = vrsqrt.pop %v337
    %v373 = vmul.f32 %v337, %v372
    %vm374 = vcmp.eq.f32.partialorder %v337, inf
    %v375 = vsel %vm374, %v337, %v373
    %vm376 = vcmp.eq.f32.partialorder %v337, 0.0
    %v377 = vand.u32 %v337, 2147483648
    %v378 = vsel %vm376, %v377, %v375
    %v379 = vrsqrt.pop %v346
    %v380 = vmul.f32 %v346, %v379
    %vm381 = vcmp.eq.f32.partialorder %v346, inf
    %v382 = vsel %vm381, %v346, %v380
    %vm383 = vcmp.eq.f32.partialorder %v346, 0.0
    %v384 = vand.u32 %v346, 2147483648
    %v385 = vsel %vm383, %v384, %v382
    %v386 = vrsqrt.pop %v355
    %v387 = vmul.f32 %v355, %v386
    %vm388 = vcmp.eq.f32.partialorder %v355, inf
    %v389 = vsel %vm388, %v355, %v387
    %vm390 = vcmp.eq.f32.partialorder %v355, 0.0
    %v391 = vand.u32 %v355, 2147483648
    %v392 = vsel %vm390, %v391, %v389
    %v393 = vrsqrt.pop %v364
    %v394 = vmul.f32 %v364, %v393
    %vm395 = vcmp.eq.f32.partialorder %v364, inf
    %v396 = vsel %vm395, %v364, %v394
    %vm397 = vcmp.eq.f32.partialorder %v364, 0.0
    %v398 = vand.u32 %v364, 2147483648
    %v399 = vsel %vm397, %v398, %v396
    %v400 = vadd.f32 %v371, 1e-05
    %v401 = vadd.f32 %v378, 1e-05
    %v402 = vadd.f32 %v385, 1e-05
    %v403 = vadd.f32 %v392, 1e-05
    %v404 = vadd.f32 %v399, 1e-05
    %v405 = vrcp.pop %v400
    %v406 = vrcp.pop %v401
    %v407 = vrcp.pop %v402
    %v408 = vrcp.pop %v403
    %v409 = vrcp.pop %v404
    %v410 = vmul.f32 %v400, %v405
    %v411 = vmul.f32 %v401, %v406
    %v412 = vmul.f32 %v402, %v407
    %v413 = vmul.f32 %v403, %v408
    %v414 = vmul.f32 %v404, %v409
    %v415 = vsub.f32 2.0, %v410
    %v416 = vsub.f32 2.0, %v411
    %v417 = vsub.f32 2.0, %v412
    %v418 = vsub.f32 2.0, %v413
    %v419 = vsub.f32 2.0, %v414
    %v420 = vmul.f32 %v405, %v415
    %v421 = vmul.f32 %v406, %v416
    %v422 = vmul.f32 %v407, %v417
    %v423 = vmul.f32 %v408, %v418
    %v424 = vmul.f32 %v409, %v419
    %v425 = vmul.f32 %v59, %v420
    %v426 = vmul.f32 %v60, %v421
    %v427 = vmul.f32 %v61, %v422
    %v428 = vmul.f32 %v62, %v423
    %v429 = vmul.f32 %v63, %v424
    %v430 = vmul.f32 %v64, %v420
    %v431 = vmul.f32 %v65, %v421
    %v432 = vmul.f32 %v66, %v422
    %v433 = vmul.f32 %v67, %v423
    %v434 = vmul.f32 %v68, %v424
    %v435 = vmul.f32 %v69, %v420
    %v436 = vmul.f32 %v70, %v421
    %v437 = vmul.f32 %v71, %v422
    %v438 = vmul.f32 %v72, %v423
    %v439 = vmul.f32 %v73, %v424
    %v440 = vmul.f32 %v74, %v420
    %v441 = vmul.f32 %v75, %v421
    %v442 = vmul.f32 %v76, %v422
    %v443 = vmul.f32 %v77, %v423
    %v444 = vmul.f32 %v78, %v424
    %v445 = vmul.f32 %v79, %v420
    %v446 = vmul.f32 %v80, %v421
    %v447 = vmul.f32 %v81, %v422
    %v448 = vmul.f32 %v82, %v423
    %v449 = vmul.f32 %v83, %v424
    %v450 = vsub.f32 1.0, %v425
    %v451 = vsub.f32 1.0, %v426
    %v452 = vsub.f32 1.0, %v427
    %v453 = vsub.f32 1.0, %v428
    %v454 = vsub.f32 1.0, %v429
    %v455 = vsub.f32 0.0, %v430
    %v456 = vsub.f32 0.0, %v431
    %v457 = vsub.f32 0.0, %v432
    %v458 = vsub.f32 0.0, %v433
    %v459 = vsub.f32 0.0, %v434
    %v460 = vsub.f32 0.0, %v435
    %v461 = vsub.f32 0.0, %v436
    %v462 = vsub.f32 0.0, %v437
    %v463 = vsub.f32 0.0, %v438
    %v464 = vsub.f32 0.0, %v439
    %v465 = vsub.f32 0.0, %v440
    %v466 = vsub.f32 0.0, %v441
    %v467 = vsub.f32 0.0, %v442
    %v468 = vsub.f32 0.0, %v443
    %v469 = vsub.f32 0.0, %v444
    %v470 = vsub.f32 0.0, %v445
    %v471 = vsub.f32 0.0, %v446
    %v472 = vsub.f32 0.0, %v447
    %v473 = vsub.f32 0.0, %v448
    %v474 = vsub.f32 0.0, %v449
    %v475 = vmul.f32 %v450, %v450
    %v476 = vmul.f32 %v451, %v451
    %v477 = vmul.f32 %v452, %v452
    %v478 = vmul.f32 %v453, %v453
    %v479 = vmul.f32 %v454, %v454
    %v480 = vmul.f32 %v455, %v455
    %v481 = vmul.f32 %v456, %v456
    %v482 = vmul.f32 %v457, %v457
    %v483 = vmul.f32 %v458, %v458
    %v484 = vmul.f32 %v459, %v459
    %v485 = vmul.f32 %v460, %v460
    %v486 = vmul.f32 %v461, %v461
    %v487 = vmul.f32 %v462, %v462
    %v488 = vmul.f32 %v463, %v463
    %v489 = vmul.f32 %v464, %v464
    %v490 = vmul.f32 %v465, %v465
    %v491 = vmul.f32 %v466, %v466
    %v492 = vmul.f32 %v467, %v467
    %v493 = vmul.f32 %v468, %v468
    %v494 = vmul.f32 %v469, %v469
    %v495 = vmul.f32 %v470, %v470
    %v496 = vmul.f32 %v471, %v471
    %v497 = vmul.f32 %v472, %v472
    %v498 = vmul.f32 %v473, %v473
    %v499 = vmul.f32 %v474, %v474
    %v500 = vsel %vm319, %v475, 0.0
    %v501 = vsel %vm319, %v480, 0.0
    %v502 = vadd.f32 %v500, %v501
    %v503 = vsel %vm319, %v485, 0.0
    %v504 = vadd.f32 %v502, %v503
    %v505 = vsel %vm319, %v490, 0.0
    %v506 = vadd.f32 %v504, %v505
    %v507 = vsel %vm319, %v495, 0.0
    %v508 = vadd.f32 %v506, %v507
    %v509 = vsel %vm319, %v476, 0.0
    %v510 = vsel %vm319, %v481, 0.0
    %v511 = vadd.f32 %v509, %v510
    %v512 = vsel %vm319, %v486, 0.0
    %v513 = vadd.f32 %v511, %v512
    %v514 = vsel %vm319, %v491, 0.0
    %v515 = vadd.f32 %v513, %v514
    %v516 = vsel %vm319, %v496, 0.0
    %v517 = vadd.f32 %v515, %v516
    %v518 = vsel %vm319, %v477, 0.0
    %v519 = vsel %vm319, %v482, 0.0
    %v520 = vadd.f32 %v518, %v519
    %v521 = vsel %vm319, %v487, 0.0
    %v522 = vadd.f32 %v520, %v521
    %v523 = vsel %vm319, %v492, 0.0
    %v524 = vadd.f32 %v522, %v523
    %v525 = vsel %vm319, %v497, 0.0
    %v526 = vadd.f32 %v524, %v525
    %v527 = vsel %vm319, %v478, 0.0
    %v528 = vsel %vm319, %v483, 0.0
    %v529 = vadd.f32 %v527, %v528
    %v530 = vsel %vm319, %v488, 0.0
    %v531 = vadd.f32 %v529, %v530
    %v532 = vsel %vm319, %v493, 0.0
    %v533 = vadd.f32 %v531, %v532
    %v534 = vsel %vm319, %v498, 0.0
    %v535 = vadd.f32 %v533, %v534
    %v536 = vsel %vm319, %v479, 0.0
    %v537 = vsel %vm319, %v484, 0.0
    %v538 = vadd.f32 %v536, %v537
    %v539 = vsel %vm319, %v489, 0.0
    %v540 = vadd.f32 %v538, %v539
    %v541 = vsel %vm319, %v494, 0.0
    %v542 = vadd.f32 %v540, %v541
    %v543 = vsel %vm319, %v499, 0.0
    %v544 = vadd.f32 %v542, %v543
    %v545 = vrsqrt.pop %v508
    %v546 = vmul.f32 %v508, %v545
    %vm547 = vcmp.eq.f32.partialorder %v508, inf
    %v548 = vsel %vm547, %v508, %v546
    %vm549 = vcmp.eq.f32.partialorder %v508, 0.0
    %v550 = vand.u32 %v508, 2147483648
    %v551 = vsel %vm549, %v550, %v548
    %v552 = vrsqrt.pop %v517
    %v553 = vmul.f32 %v517, %v552
    %vm554 = vcmp.eq.f32.partialorder %v517, inf
    %v555 = vsel %vm554, %v517, %v553
    %vm556 = vcmp.eq.f32.partialorder %v517, 0.0
    %v557 = vand.u32 %v517, 2147483648
    %v558 = vsel %vm556, %v557, %v555
    %v559 = vrsqrt.pop %v526
    %v560 = vmul.f32 %v526, %v559
    %vm561 = vcmp.eq.f32.partialorder %v526, inf
    %v562 = vsel %vm561, %v526, %v560
    %vm563 = vcmp.eq.f32.partialorder %v526, 0.0
    %v564 = vand.u32 %v526, 2147483648
    %v565 = vsel %vm563, %v564, %v562
    %v566 = vrsqrt.pop %v535
    %v567 = vmul.f32 %v535, %v566
    %vm568 = vcmp.eq.f32.partialorder %v535, inf
    %v569 = vsel %vm568, %v535, %v567
    %vm570 = vcmp.eq.f32.partialorder %v535, 0.0
    %v571 = vand.u32 %v535, 2147483648
    %v572 = vsel %vm570, %v571, %v569
    %v573 = vrsqrt.pop %v544
    %v574 = vmul.f32 %v544, %v573
    %vm575 = vcmp.eq.f32.partialorder %v544, inf
    %v576 = vsel %vm575, %v544, %v574
    %vm577 = vcmp.eq.f32.partialorder %v544, 0.0
    %v578 = vand.u32 %v544, 2147483648
    %v579 = vsel %vm577, %v578, %v576
    %v580 = vadd.f32 %v551, 1e-05
    %v581 = vadd.f32 %v558, 1e-05
    %v582 = vadd.f32 %v565, 1e-05
    %v583 = vadd.f32 %v572, 1e-05
    %v584 = vadd.f32 %v579, 1e-05
    %v585 = vrcp.pop %v580
    %v586 = vrcp.pop %v581
    %v587 = vrcp.pop %v582
    %v588 = vrcp.pop %v583
    %v589 = vrcp.pop %v584
    %v590 = vmul.f32 %v580, %v585
    %v591 = vmul.f32 %v581, %v586
    %v592 = vmul.f32 %v582, %v587
    %v593 = vmul.f32 %v583, %v588
    %v594 = vmul.f32 %v584, %v589
    %v595 = vsub.f32 2.0, %v590
    %v596 = vsub.f32 2.0, %v591
    %v597 = vsub.f32 2.0, %v592
    %v598 = vsub.f32 2.0, %v593
    %v599 = vsub.f32 2.0, %v594
    %v600 = vmul.f32 %v585, %v595
    %v601 = vmul.f32 %v586, %v596
    %v602 = vmul.f32 %v587, %v597
    %v603 = vmul.f32 %v588, %v598
    %v604 = vmul.f32 %v589, %v599
    %v605 = vmul.f32 %v450, %v600
    %v606 = vmul.f32 %v451, %v601
    %v607 = vmul.f32 %v452, %v602
    %v608 = vmul.f32 %v453, %v603
    %v609 = vmul.f32 %v454, %v604
    %v610 = vmul.f32 %v455, %v600
    %v611 = vmul.f32 %v456, %v601
    %v612 = vmul.f32 %v457, %v602
    %v613 = vmul.f32 %v458, %v603
    %v614 = vmul.f32 %v459, %v604
    %v615 = vmul.f32 %v460, %v600
    %v616 = vmul.f32 %v461, %v601
    %v617 = vmul.f32 %v462, %v602
    %v618 = vmul.f32 %v463, %v603
    %v619 = vmul.f32 %v464, %v604
    %v620 = vmul.f32 %v465, %v600
    %v621 = vmul.f32 %v466, %v601
    %v622 = vmul.f32 %v467, %v602
    %v623 = vmul.f32 %v468, %v603
    %v624 = vmul.f32 %v469, %v604
    %v625 = vmul.f32 %v470, %v600
    %v626 = vmul.f32 %v471, %v601
    %v627 = vmul.f32 %v472, %v602
    %v628 = vmul.f32 %v473, %v603
    %v629 = vmul.f32 %v474, %v604
    %v655 = vlaneseq
    %v656 = vshrl.u32 %v655, 7
    %v657 = vsub.s32 0, %v656
    %v658 = vrot.slane %v605, %v657
    %v659 = vlaneseq
    %v660 = vshrl.u32 %v659, 7
    %v661 = vsub.s32 0, %v660
    %v662 = vrot.slane %v606, %v661
    %v663 = vlaneseq
    %v664 = vshrl.u32 %v663, 7
    %v665 = vsub.s32 0, %v664
    %v666 = vrot.slane %v607, %v665
    %v667 = vlaneseq
    %v668 = vshrl.u32 %v667, 7
    %v669 = vsub.s32 0, %v668
    %v670 = vrot.slane %v608, %v669
    %v671 = vlaneseq
    %v672 = vshrl.u32 %v671, 7
    %v673 = vsub.s32 0, %v672
    %v674 = vrot.slane %v609, %v673
    %v675 = vlaneseq
    %v676 = vshrl.u32 %v675, 7
    %v677 = vsub.s32 0, %v676
    %v678 = vrot.slane %v610, %v677
    %v679 = vlaneseq
    %v680 = vshrl.u32 %v679, 7
    %v681 = vsub.s32 0, %v680
    %v682 = vrot.slane %v611, %v681
    %v683 = vlaneseq
    %v684 = vshrl.u32 %v683, 7
    %v685 = vsub.s32 0, %v684
    %v686 = vrot.slane %v612, %v685
    %v687 = vlaneseq
    %v688 = vshrl.u32 %v687, 7
    %v689 = vsub.s32 0, %v688
    %v690 = vrot.slane %v613, %v689
    %v691 = vlaneseq
    %v692 = vshrl.u32 %v691, 7
    %v693 = vsub.s32 0, %v692
    %v694 = vrot.slane %v614, %v693
    %v695 = vlaneseq
    %v696 = vshrl.u32 %v695, 7
    %v697 = vsub.s32 0, %v696
    %v698 = vrot.slane %v615, %v697
    %v699 = vlaneseq
    %v700 = vshrl.u32 %v699, 7
    %v701 = vsub.s32 0, %v700
    %v702 = vrot.slane %v616, %v701
    %v703 = vlaneseq
    %v704 = vshrl.u32 %v703, 7
    %v705 = vsub.s32 0, %v704
    %v706 = vrot.slane %v617, %v705
    %v707 = vlaneseq
    %v708 = vshrl.u32 %v707, 7
    %v709 = vsub.s32 0, %v708
    %v710 = vrot.slane %v618, %v709
    %v711 = vlaneseq
    %v712 = vshrl.u32 %v711, 7
    %v713 = vsub.s32 0, %v712
    %v714 = vrot.slane %v619, %v713
    %v715 = vlaneseq
    %v716 = vshrl.u32 %v715, 7
    %v717 = vsub.s32 0, %v716
    %v718 = vrot.slane %v620, %v717
    %v719 = vlaneseq
    %v720 = vshrl.u32 %v719, 7
    %v721 = vsub.s32 0, %v720
    %v722 = vrot.slane %v621, %v721
    %v723 = vlaneseq
    %v724 = vshrl.u32 %v723, 7
    %v725 = vsub.s32 0, %v724
    %v726 = vrot.slane %v622, %v725
    %v727 = vlaneseq
    %v728 = vshrl.u32 %v727, 7
    %v729 = vsub.s32 0, %v728
    %v730 = vrot.slane %v623, %v729
    %v731 = vlaneseq
    %v732 = vshrl.u32 %v731, 7
    %v733 = vsub.s32 0, %v732
    %v734 = vrot.slane %v624, %v733
    %v735 = vlaneseq
    %v736 = vshrl.u32 %v735, 7
    %v737 = vsub.s32 0, %v736
    %v738 = vrot.slane %v625, %v737
    %v739 = vlaneseq
    %v740 = vshrl.u32 %v739, 7
    %v741 = vsub.s32 0, %v740
    %v742 = vrot.slane %v626, %v741
    %v743 = vlaneseq
    %v744 = vshrl.u32 %v743, 7
    %v745 = vsub.s32 0, %v744
    %v746 = vrot.slane %v627, %v745
    %v747 = vlaneseq
    %v748 = vshrl.u32 %v747, 7
    %v749 = vsub.s32 0, %v748
    %v750 = vrot.slane %v628, %v749
    %v751 = vlaneseq
    %v752 = vshrl.u32 %v751, 7
    %v753 = vsub.s32 0, %v752
    %v754 = vrot.slane %v629, %v753
    %v780 = vmul.f32 %v84, %v658
    %v781 = vmul.f32 %v85, %v662
    %v782 = vmul.f32 %v86, %v666
    %v783 = vmul.f32 %v87, %v670
    %v784 = vmul.f32 %v88, %v674
    %v785 = vmul.f32 %v274, %v678
    %v786 = vmul.f32 %v275, %v682
    %v787 = vmul.f32 %v276, %v686
    %v788 = vmul.f32 %v277, %v690
    %v789 = vmul.f32 %v278, %v694
    %v790 = vmul.f32 %v279, %v698
    %v791 = vmul.f32 %v280, %v702
    %v792 = vmul.f32 %v281, %v706
    %v793 = vmul.f32 %v282, %v710
    %v794 = vmul.f32 %v283, %v714
    %v795 = vmul.f32 %v284, %v718
    %v796 = vmul.f32 %v285, %v722
    %v797 = vmul.f32 %v286, %v726
    %v798 = vmul.f32 %v287, %v730
    %v799 = vmul.f32 %v288, %v734
    %v800 = vmul.f32 %v289, %v738
    %v801 = vmul.f32 %v290, %v742
    %v802 = vmul.f32 %v291, %v746
    %v803 = vmul.f32 %v292, %v750
    %v804 = vmul.f32 %v293, %v754
    %v805 = vadd.f32 %v780, %v785
    %v806 = vadd.f32 %v805, %v790
    %v807 = vadd.f32 %v806, %v795
    %v808 = vadd.f32 %v807, %v800
    %v809 = vadd.f32 %v781, %v786
    %v810 = vadd.f32 %v809, %v791
    %v811 = vadd.f32 %v810, %v796
    %v812 = vadd.f32 %v811, %v801
    %v813 = vadd.f32 %v782, %v787
    %v814 = vadd.f32 %v813, %v792
    %v815 = vadd.f32 %v814, %v797
    %v816 = vadd.f32 %v815, %v802
    %v817 = vadd.f32 %v783, %v788
    %v818 = vadd.f32 %v817, %v793
    %v819 = vadd.f32 %v818, %v798
    %v820 = vadd.f32 %v819, %v803
    %v821 = vadd.f32 %v784, %v789
    %v822 = vadd.f32 %v821, %v794
    %v823 = vadd.f32 %v822, %v799
    %v824 = vadd.f32 %v823, %v804
    %v825 = vmul.f32 %v808, 2.0
    %v826 = vmul.f32 %v812, 2.0
    %v827 = vmul.f32 %v816, 2.0
    %v828 = vmul.f32 %v820, 2.0
    %v829 = vmul.f32 %v824, 2.0
    %v830 = vmul.f32 %v825, %v658
    %v831 = vmul.f32 %v826, %v662
    %v832 = vmul.f32 %v827, %v666
    %v833 = vmul.f32 %v828, %v670
    %v834 = vmul.f32 %v829, %v674
    %v835 = vmul.f32 %v825, %v678
    %v836 = vmul.f32 %v826, %v682
    %v837 = vmul.f32 %v827, %v686
    %v838 = vmul.f32 %v828, %v690
    %v839 = vmul.f32 %v829, %v694
    %v840 = vmul.f32 %v825, %v698
    %v841 = vmul.f32 %v826, %v702
    %v842 = vmul.f32 %v827, %v706
    %v843 = vmul.f32 %v828, %v710
    %v844 = vmul.f32 %v829, %v714
    %v845 = vmul.f32 %v825, %v718
    %v846 = vmul.f32 %v826, %v722
    %v847 = vmul.f32 %v827, %v726
    %v848 = vmul.f32 %v828, %v730
    %v849 = vmul.f32 %v829, %v734
    %v850 = vmul.f32 %v825, %v738
    %v851 = vmul.f32 %v826, %v742
    %v852 = vmul.f32 %v827, %v746
    %v853 = vmul.f32 %v828, %v750
    %v854 = vmul.f32 %v829, %v754
    %v855 = vsub.f32 %v84, %v830
    %v856 = vsub.f32 %v85, %v831
    %v857 = vsub.f32 %v86, %v832
    %v858 = vsub.f32 %v87, %v833
    %v859 = vsub.f32 %v88, %v834
    %v860 = vsub.f32 %v274, %v835
    %v861 = vsub.f32 %v275, %v836
    %v862 = vsub.f32 %v276, %v837
    %v863 = vsub.f32 %v277, %v838
    %v864 = vsub.f32 %v278, %v839
    %v865 = vsub.f32 %v279, %v840
    %v866 = vsub.f32 %v280, %v841
    %v867 = vsub.f32 %v281, %v842
    %v868 = vsub.f32 %v282, %v843
    %v869 = vsub.f32 %v283, %v844
    %v870 = vsub.f32 %v284, %v845
    %v871 = vsub.f32 %v285, %v846
    %v872 = vsub.f32 %v286, %v847
    %v873 = vsub.f32 %v287, %v848
    %v874 = vsub.f32 %v288, %v849
    %v875 = vsub.f32 %v289, %v850
    %v876 = vsub.f32 %v290, %v851
    %v877 = vsub.f32 %v291, %v852
    %v878 = vsub.f32 %v292, %v853
    %v879 = vsub.f32 %v293, %v854
    %v880 = vmax.f32 %v371, 1e-06
    %v881 = vmax.f32 %v378, 1e-06
    %v882 = vmax.f32 %v385, 1e-06
    %v883 = vmax.f32 %v392, 1e-06
    %v884 = vmax.f32 %v399, 1e-06
    %v910 = vlaneseq
    %v911 = vshrl.u32 %v910, 7
    %v912 = vsub.s32 0, %v911
    %v913 = vrot.slane %v425, %v912
    %v914 = vlaneseq
    %v915 = vshrl.u32 %v914, 7
    %v916 = vsub.s32 0, %v915
    %v917 = vrot.slane %v426, %v916
    %v918 = vlaneseq
    %v919 = vshrl.u32 %v918, 7
    %v920 = vsub.s32 0, %v919
    %v921 = vrot.slane %v427, %v920
    %v922 = vlaneseq
    %v923 = vshrl.u32 %v922, 7
    %v924 = vsub.s32 0, %v923
    %v925 = vrot.slane %v428, %v924
    %v926 = vlaneseq
    %v927 = vshrl.u32 %v926, 7
    %v928 = vsub.s32 0, %v927
    %v929 = vrot.slane %v429, %v928
    %v930 = vlaneseq
    %v931 = vshrl.u32 %v930, 7
    %v932 = vsub.s32 0, %v931
    %v933 = vrot.slane %v430, %v932
    %v934 = vlaneseq
    %v935 = vshrl.u32 %v934, 7
    %v936 = vsub.s32 0, %v935
    %v937 = vrot.slane %v431, %v936
    %v938 = vlaneseq
    %v939 = vshrl.u32 %v938, 7
    %v940 = vsub.s32 0, %v939
    %v941 = vrot.slane %v432, %v940
    %v942 = vlaneseq
    %v943 = vshrl.u32 %v942, 7
    %v944 = vsub.s32 0, %v943
    %v945 = vrot.slane %v433, %v944
    %v946 = vlaneseq
    %v947 = vshrl.u32 %v946, 7
    %v948 = vsub.s32 0, %v947
    %v949 = vrot.slane %v434, %v948
    %v950 = vlaneseq
    %v951 = vshrl.u32 %v950, 7
    %v952 = vsub.s32 0, %v951
    %v953 = vrot.slane %v435, %v952
    %v954 = vlaneseq
    %v955 = vshrl.u32 %v954, 7
    %v956 = vsub.s32 0, %v955
    %v957 = vrot.slane %v436, %v956
    %v958 = vlaneseq
    %v959 = vshrl.u32 %v958, 7
    %v960 = vsub.s32 0, %v959
    %v961 = vrot.slane %v437, %v960
    %v962 = vlaneseq
    %v963 = vshrl.u32 %v962, 7
    %v964 = vsub.s32 0, %v963
    %v965 = vrot.slane %v438, %v964
    %v966 = vlaneseq
    %v967 = vshrl.u32 %v966, 7
    %v968 = vsub.s32 0, %v967
    %v969 = vrot.slane %v439, %v968
    %v970 = vlaneseq
    %v971 = vshrl.u32 %v970, 7
    %v972 = vsub.s32 0, %v971
    %v973 = vrot.slane %v440, %v972
    %v974 = vlaneseq
    %v975 = vshrl.u32 %v974, 7
    %v976 = vsub.s32 0, %v975
    %v977 = vrot.slane %v441, %v976
    %v978 = vlaneseq
    %v979 = vshrl.u32 %v978, 7
    %v980 = vsub.s32 0, %v979
    %v981 = vrot.slane %v442, %v980
    %v982 = vlaneseq
    %v983 = vshrl.u32 %v982, 7
    %v984 = vsub.s32 0, %v983
    %v985 = vrot.slane %v443, %v984
    %v986 = vlaneseq
    %v987 = vshrl.u32 %v986, 7
    %v988 = vsub.s32 0, %v987
    %v989 = vrot.slane %v444, %v988
    %v990 = vlaneseq
    %v991 = vshrl.u32 %v990, 7
    %v992 = vsub.s32 0, %v991
    %v993 = vrot.slane %v445, %v992
    %v994 = vlaneseq
    %v995 = vshrl.u32 %v994, 7
    %v996 = vsub.s32 0, %v995
    %v997 = vrot.slane %v446, %v996
    %v998 = vlaneseq
    %v999 = vshrl.u32 %v998, 7
    %v1000 = vsub.s32 0, %v999
    %v1001 = vrot.slane %v447, %v1000
    %v1002 = vlaneseq
    %v1003 = vshrl.u32 %v1002, 7
    %v1004 = vsub.s32 0, %v1003
    %v1005 = vrot.slane %v448, %v1004
    %v1006 = vlaneseq
    %v1007 = vshrl.u32 %v1006, 7
    %v1008 = vsub.s32 0, %v1007
    %v1009 = vrot.slane %v449, %v1008
    %v1035 = vmul.f32 %v913, %v855
    %v1036 = vmul.f32 %v917, %v856
    %v1037 = vmul.f32 %v921, %v857
    %v1038 = vmul.f32 %v925, %v858
    %v1039 = vmul.f32 %v929, %v859
    %v1040 = vmul.f32 %v933, %v860
    %v1041 = vmul.f32 %v937, %v861
    %v1042 = vmul.f32 %v941, %v862
    %v1043 = vmul.f32 %v945, %v863
    %v1044 = vmul.f32 %v949, %v864
    %v1045 = vmul.f32 %v953, %v865
    %v1046 = vmul.f32 %v957, %v866
    %v1047 = vmul.f32 %v961, %v867
    %v1048 = vmul.f32 %v965, %v868
    %v1049 = vmul.f32 %v969, %v869
    %v1050 = vmul.f32 %v973, %v870
    %v1051 = vmul.f32 %v977, %v871
    %v1052 = vmul.f32 %v981, %v872
    %v1053 = vmul.f32 %v985, %v873
    %v1054 = vmul.f32 %v989, %v874
    %v1055 = vmul.f32 %v993, %v875
    %v1056 = vmul.f32 %v997, %v876
    %v1057 = vmul.f32 %v1001, %v877
    %v1058 = vmul.f32 %v1005, %v878
    %v1059 = vmul.f32 %v1009, %v879
    %v1060 = vadd.f32 %v1035, %v1040
    %v1061 = vadd.f32 %v1060, %v1045
    %v1062 = vadd.f32 %v1061, %v1050
    %v1063 = vadd.f32 %v1062, %v1055
    %v1064 = vadd.f32 %v1036, %v1041
    %v1065 = vadd.f32 %v1064, %v1046
    %v1066 = vadd.f32 %v1065, %v1051
    %v1067 = vadd.f32 %v1066, %v1056
    %v1068 = vadd.f32 %v1037, %v1042
    %v1069 = vadd.f32 %v1068, %v1047
    %v1070 = vadd.f32 %v1069, %v1052
    %v1071 = vadd.f32 %v1070, %v1057
    %v1072 = vadd.f32 %v1038, %v1043
    %v1073 = vadd.f32 %v1072, %v1048
    %v1074 = vadd.f32 %v1073, %v1053
    %v1075 = vadd.f32 %v1074, %v1058
    %v1076 = vadd.f32 %v1039, %v1044
    %v1077 = vadd.f32 %v1076, %v1049
    %v1078 = vadd.f32 %v1077, %v1054
    %v1079 = vadd.f32 %v1078, %v1059
    %v1080 = vlaneseq
    %v1081 = vshrl.u32 %v1080, 7
    %v1082 = vsub.s32 0, %v1081
    %v1083 = vrot.slane %v371, %v1082
    %v1084 = vlaneseq
    %v1085 = vshrl.u32 %v1084, 7
    %v1086 = vsub.s32 0, %v1085
    %v1087 = vrot.slane %v378, %v1086
    %v1088 = vlaneseq
    %v1089 = vshrl.u32 %v1088, 7
    %v1090 = vsub.s32 0, %v1089
    %v1091 = vrot.slane %v385, %v1090
    %v1092 = vlaneseq
    %v1093 = vshrl.u32 %v1092, 7
    %v1094 = vsub.s32 0, %v1093
    %v1095 = vrot.slane %v392, %v1094
    %v1096 = vlaneseq
    %v1097 = vshrl.u32 %v1096, 7
    %v1098 = vsub.s32 0, %v1097
    %v1099 = vrot.slane %v399, %v1098
    %v1100 = vmul.f32 %v1083, %v1063
    %v1101 = vmul.f32 %v1087, %v1067
    %v1102 = vmul.f32 %v1091, %v1071
    %v1103 = vmul.f32 %v1095, %v1075
    %v1104 = vmul.f32 %v1099, %v1079
    %v1105 = vrcp.pop %v880
    %v1106 = vrcp.pop %v881
    %v1107 = vrcp.pop %v882
    %v1108 = vrcp.pop %v883
    %v1109 = vrcp.pop %v884
    %v1110 = vmul.f32 %v880, %v1105
    %v1111 = vmul.f32 %v881, %v1106
    %v1112 = vmul.f32 %v882, %v1107
    %v1113 = vmul.f32 %v883, %v1108
    %v1114 = vmul.f32 %v884, %v1109
    %v1115 = vsub.f32 2.0, %v1110
    %v1116 = vsub.f32 2.0, %v1111
    %v1117 = vsub.f32 2.0, %v1112
    %v1118 = vsub.f32 2.0, %v1113
    %v1119 = vsub.f32 2.0, %v1114
    %v1120 = vmul.f32 %v1105, %v1115
    %v1121 = vmul.f32 %v1106, %v1116
    %v1122 = vmul.f32 %v1107, %v1117
    %v1123 = vmul.f32 %v1108, %v1118
    %v1124 = vmul.f32 %v1109, %v1119
    %v1125 = vmul.f32 %v1120, 0.63661975
    %v1126 = vmul.f32 %v1121, 0.63661975
    %v1127 = vmul.f32 %v1122, 0.63661975
    %v1128 = vmul.f32 %v1123, 0.63661975
    %v1129 = vmul.f32 %v1124, 0.63661975
    %v1130 = vrsqrt.pop %v1125
    %v1131 = vmul.f32 %v1125, %v1130
    %vm1132 = vcmp.eq.f32.partialorder %v1125, inf
    %v1133 = vsel %vm1132, %v1125, %v1131
    %vm1134 = vcmp.eq.f32.partialorder %v1125, 0.0
    %v1135 = vand.u32 %v1125, 2147483648
    %v1136 = vsel %vm1134, %v1135, %v1133
    %v1137 = vrsqrt.pop %v1126
    %v1138 = vmul.f32 %v1126, %v1137
    %vm1139 = vcmp.eq.f32.partialorder %v1126, inf
    %v1140 = vsel %vm1139, %v1126, %v1138
    %vm1141 = vcmp.eq.f32.partialorder %v1126, 0.0
    %v1142 = vand.u32 %v1126, 2147483648
    %v1143 = vsel %vm1141, %v1142, %v1140
    %v1144 = vrsqrt.pop %v1127
    %v1145 = vmul.f32 %v1127, %v1144
    %vm1146 = vcmp.eq.f32.partialorder %v1127, inf
    %v1147 = vsel %vm1146, %v1127, %v1145
    %vm1148 = vcmp.eq.f32.partialorder %v1127, 0.0
    %v1149 = vand.u32 %v1127, 2147483648
    %v1150 = vsel %vm1148, %v1149, %v1147
    %v1151 = vrsqrt.pop %v1128
    %v1152 = vmul.f32 %v1128, %v1151
    %vm1153 = vcmp.eq.f32.partialorder %v1128, inf
    %v1154 = vsel %vm1153, %v1128, %v1152
    %vm1155 = vcmp.eq.f32.partialorder %v1128, 0.0
    %v1156 = vand.u32 %v1128, 2147483648
    %v1157 = vsel %vm1155, %v1156, %v1154
    %v1158 = vrsqrt.pop %v1129
    %v1159 = vmul.f32 %v1129, %v1158
    %vm1160 = vcmp.eq.f32.partialorder %v1129, inf
    %v1161 = vsel %vm1160, %v1129, %v1159
    %vm1162 = vcmp.eq.f32.partialorder %v1129, 0.0
    %v1163 = vand.u32 %v1129, 2147483648
    %v1164 = vsel %vm1162, %v1163, %v1161
    %v1165 = vmul.f32 %v880, -2.0
    %v1166 = vmul.f32 %v881, -2.0
    %v1167 = vmul.f32 %v882, -2.0
    %v1168 = vmul.f32 %v883, -2.0
    %v1169 = vmul.f32 %v884, -2.0
    %v1170 = vmul.f32 %v1165, 1.442695
    %v1171 = vpow.pop %v1170
    %v1172 = vmul.f32 %v1166, 1.442695
    %v1173 = vpow.pop %v1172
    %v1174 = vmul.f32 %v1167, 1.442695
    %v1175 = vpow.pop %v1174
    %v1176 = vmul.f32 %v1168, 1.442695
    %v1177 = vpow.pop %v1176
    %v1178 = vmul.f32 %v1169, 1.442695
    %v1179 = vpow.pop %v1178
    %v1180 = vmul.f32 %v1136, 0.5
    %v1181 = vmul.f32 %v1143, 0.5
    %v1182 = vmul.f32 %v1150, 0.5
    %v1183 = vmul.f32 %v1157, 0.5
    %v1184 = vmul.f32 %v1164, 0.5
    %v1185 = vadd.f32 %v1171, 1.0
    %v1186 = vadd.f32 %v1173, 1.0
    %v1187 = vadd.f32 %v1175, 1.0
    %v1188 = vadd.f32 %v1177, 1.0
    %v1189 = vadd.f32 %v1179, 1.0
    %v1190 = vmul.f32 %v1180, %v1185
    %v1191 = vmul.f32 %v1181, %v1186
    %v1192 = vmul.f32 %v1182, %v1187
    %v1193 = vmul.f32 %v1183, %v1188
    %v1194 = vmul.f32 %v1184, %v1189
    %v1195 = vsub.f32 1.0, %v1171
    %v1196 = vsub.f32 1.0, %v1173
    %v1197 = vsub.f32 1.0, %v1175
    %v1198 = vsub.f32 1.0, %v1177
    %v1199 = vsub.f32 1.0, %v1179
    %v1200 = vmul.f32 %v1180, %v1195
    %v1201 = vmul.f32 %v1181, %v1196
    %v1202 = vmul.f32 %v1182, %v1197
    %v1203 = vmul.f32 %v1183, %v1198
    %v1204 = vmul.f32 %v1184, %v1199
    %v1205 = vmul.f32 %v1120, %v1200
    %v1206 = vmul.f32 %v1121, %v1201
    %v1207 = vmul.f32 %v1122, %v1202
    %v1208 = vmul.f32 %v1123, %v1203
    %v1209 = vmul.f32 %v1124, %v1204
    %v1210 = vsub.f32 %v1190, %v1205
    %v1211 = vsub.f32 %v1191, %v1206
    %v1212 = vsub.f32 %v1192, %v1207
    %v1213 = vsub.f32 %v1193, %v1208
    %v1214 = vsub.f32 %v1194, %v1209
    %v1215 = vmax.f32 %v1210, 1e-37
    %v1216 = vmax.f32 %v1211, 1e-37
    %v1217 = vmax.f32 %v1212, 1e-37
    %v1218 = vmax.f32 %v1213, 1e-37
    %v1219 = vmax.f32 %v1214, 1e-37
    %v1220 = vlog2.pop %v1215
    %v1221 = vmul.f32 %v1220, 0.6931472
    %v1222 = vlog2.pop %v1216
    %v1223 = vmul.f32 %v1222, 0.6931472
    %v1224 = vlog2.pop %v1217
    %v1225 = vmul.f32 %v1224, 0.6931472
    %v1226 = vlog2.pop %v1218
    %v1227 = vmul.f32 %v1226, 0.6931472
    %v1228 = vlog2.pop %v1219
    %v1229 = vmul.f32 %v1228, 0.6931472
    %v1230 = vmul.f32 %v880, 0.25
    %v1231 = vmul.f32 %v881, 0.25
    %v1232 = vmul.f32 %v882, 0.25
    %v1233 = vmul.f32 %v883, 0.25
    %v1234 = vmul.f32 %v884, 0.25
    %v1235 = vmul.f32 %v1230, %v880
    %v1236 = vmul.f32 %v1231, %v881
    %v1237 = vmul.f32 %v1232, %v882
    %v1238 = vmul.f32 %v1233, %v883
    %v1239 = vmul.f32 %v1234, %v884
    %v1240 = vmul.f32 %v880, 0.5
    %v1241 = vmul.f32 %v881, 0.5
    %v1242 = vmul.f32 %v882, 0.5
    %v1243 = vmul.f32 %v883, 0.5
    %v1244 = vmul.f32 %v884, 0.5
    %v1245 = vlog2.pop %v1240
    %v1246 = vmul.f32 %v1245, 0.6931472
    %v1247 = vlog2.pop %v1241
    %v1248 = vmul.f32 %v1247, 0.6931472
    %v1249 = vlog2.pop %v1242
    %v1250 = vmul.f32 %v1249, 0.6931472
    %v1251 = vlog2.pop %v1243
    %v1252 = vmul.f32 %v1251, 0.6931472
    %v1253 = vlog2.pop %v1244
    %v1254 = vmul.f32 %v1253, 0.6931472
    %v1255 = vmul.f32 %v1246, 1.5
    %v1256 = vmul.f32 %v1248, 1.5
    %v1257 = vmul.f32 %v1250, 1.5
    %v1258 = vmul.f32 %v1252, 1.5
    %v1259 = vmul.f32 %v1254, 1.5
    %v1260 = vsub.f32 %v1255, %v880
    %v1261 = vsub.f32 %v1256, %v881
    %v1262 = vsub.f32 %v1257, %v882
    %v1263 = vsub.f32 %v1258, %v883
    %v1264 = vsub.f32 %v1259, %v884
    %v1265 = vmul.f32 %v1235, 0.0031841388
    %v1266 = vmul.f32 %v1236, 0.0031841388
    %v1267 = vmul.f32 %v1237, 0.0031841388
    %v1268 = vmul.f32 %v1238, 0.0031841388
    %v1269 = vmul.f32 %v1239, 0.0031841388
    %v1270 = vadd.f32 %v1265, 0.04298587
    %v1271 = vadd.f32 %v1266, 0.04298587
    %v1272 = vadd.f32 %v1267, 0.04298587
    %v1273 = vadd.f32 %v1268, 0.04298587
    %v1274 = vadd.f32 %v1269, 0.04298587
    %v1275 = vmul.f32 %v1235, %v1270
    %v1276 = vmul.f32 %v1236, %v1271
    %v1277 = vmul.f32 %v1237, %v1272
    %v1278 = vmul.f32 %v1238, %v1273
    %v1279 = vmul.f32 %v1239, %v1274
    %v1280 = vadd.f32 %v1275, 0.30090111
    %v1281 = vadd.f32 %v1276, 0.30090111
    %v1282 = vadd.f32 %v1277, 0.30090111
    %v1283 = vadd.f32 %v1278, 0.30090111
    %v1284 = vadd.f32 %v1279, 0.30090111
    %v1285 = vmul.f32 %v1235, %v1280
    %v1286 = vmul.f32 %v1236, %v1281
    %v1287 = vmul.f32 %v1237, %v1282
    %v1288 = vmul.f32 %v1238, %v1283
    %v1289 = vmul.f32 %v1239, %v1284
    %v1290 = vadd.f32 %v1285, 0.75225276
    %v1291 = vadd.f32 %v1286, 0.75225276
    %v1292 = vadd.f32 %v1287, 0.75225276
    %v1293 = vadd.f32 %v1288, 0.75225276
    %v1294 = vadd.f32 %v1289, 0.75225276
    %v1295 = vlog2.pop %v1290
    %v1296 = vmul.f32 %v1295, 0.6931472
    %v1297 = vlog2.pop %v1291
    %v1298 = vmul.f32 %v1297, 0.6931472
    %v1299 = vlog2.pop %v1292
    %v1300 = vmul.f32 %v1299, 0.6931472
    %v1301 = vlog2.pop %v1293
    %v1302 = vmul.f32 %v1301, 0.6931472
    %v1303 = vlog2.pop %v1294
    %v1304 = vmul.f32 %v1303, 0.6931472
    %v1305 = vadd.f32 %v1260, %v1296
    %v1306 = vadd.f32 %v1261, %v1298
    %v1307 = vadd.f32 %v1262, %v1300
    %v1308 = vadd.f32 %v1263, %v1302
    %v1309 = vadd.f32 %v1264, %v1304
    %vm1310 = vcmp.lt.f32.partialorder %v880, 0.5
    %vm1311 = vcmp.lt.f32.partialorder %v881, 0.5
    %vm1312 = vcmp.lt.f32.partialorder %v882, 0.5
    %vm1313 = vcmp.lt.f32.partialorder %v883, 0.5
    %vm1314 = vcmp.lt.f32.partialorder %v884, 0.5
    %v1315 = vsel %vm1310, %v1305, %v1221
    %v1316 = vsel %vm1311, %v1306, %v1223
    %v1317 = vsel %vm1312, %v1307, %v1225
    %v1318 = vsel %vm1313, %v1308, %v1227
    %v1319 = vsel %vm1314, %v1309, %v1229
    %v1320 = vlog2.pop %v880
    %v1321 = vmul.f32 %v1320, 0.6931472
    %v1322 = vlog2.pop %v881
    %v1323 = vmul.f32 %v1322, 0.6931472
    %v1324 = vlog2.pop %v882
    %v1325 = vmul.f32 %v1324, 0.6931472
    %v1326 = vlog2.pop %v883
    %v1327 = vmul.f32 %v1326, 0.6931472
    %v1328 = vlog2.pop %v884
    %v1329 = vmul.f32 %v1328, 0.6931472
    %v1330 = vmul.f32 %v1321, 1.5
    %v1331 = vmul.f32 %v1323, 1.5
    %v1332 = vmul.f32 %v1325, 1.5
    %v1333 = vmul.f32 %v1327, 1.5
    %v1334 = vmul.f32 %v1329, 1.5
    %v1335 = vsub.f32 %v1330, 4.5946927
    %v1336 = vsub.f32 %v1331, 4.5946927
    %v1337 = vsub.f32 %v1332, 4.5946927
    %v1338 = vsub.f32 %v1333, 4.5946927
    %v1339 = vsub.f32 %v1334, 4.5946927
    %v1340 = vadd.f32 %v880, %v1315
    %v1341 = vadd.f32 %v881, %v1316
    %v1342 = vadd.f32 %v882, %v1317
    %v1343 = vadd.f32 %v883, %v1318
    %v1344 = vadd.f32 %v884, %v1319
    %v1345 = vsub.f32 %v1335, %v1340
    %v1346 = vsub.f32 %v1336, %v1341
    %v1347 = vsub.f32 %v1337, %v1342
    %v1348 = vsub.f32 %v1338, %v1343
    %v1349 = vsub.f32 %v1339, %v1344
    %v1350 = vlaneseq
    %v1351 = vshrl.u32 %v1350, 7
    %v1352 = vsub.s32 0, %v1351
    %v1353 = vrot.slane %v1345, %v1352
    %v1354 = vlaneseq
    %v1355 = vshrl.u32 %v1354, 7
    %v1356 = vsub.s32 0, %v1355
    %v1357 = vrot.slane %v1346, %v1356
    %v1358 = vlaneseq
    %v1359 = vshrl.u32 %v1358, 7
    %v1360 = vsub.s32 0, %v1359
    %v1361 = vrot.slane %v1347, %v1360
    %v1362 = vlaneseq
    %v1363 = vshrl.u32 %v1362, 7
    %v1364 = vsub.s32 0, %v1363
    %v1365 = vrot.slane %v1348, %v1364
    %v1366 = vlaneseq
    %v1367 = vshrl.u32 %v1366, 7
    %v1368 = vsub.s32 0, %v1367
    %v1369 = vrot.slane %v1349, %v1368
    %v1370 = vadd.f32 %v1100, %v1353
    %v1371 = vadd.f32 %v1101, %v1357
    %v1372 = vadd.f32 %v1102, %v1361
    %v1373 = vadd.f32 %v1103, %v1365
    %v1374 = vadd.f32 %v1104, %v1369
    %v1375 = vadd.f32 %v1370, %v1371
    %v1376 = vadd.f32 %v1375, %v1372
    %v1377 = vadd.f32 %v1376, %v1373
    %v1378 = vadd.f32 %v1377, %v1374
    %1379 = vst [vmem:[#allocation8] sm:$0xff] %v855
    %1380 = vst [vmem:[#allocation8 + $0x8] sm:$0xff] %v856
    %1381 = vst [vmem:[#allocation8 + $0x10] sm:$0xff] %v857
    %1382 = vst [vmem:[#allocation8 + $0x18] sm:$0xff] %v858
    %1383 = vst [vmem:[#allocation8 + $0x20] sm:$0xff] %v859
    %1384 = vst [vmem:[#allocation8 + $0x28] sm:$0xff] %v860
    %1385 = vst [vmem:[#allocation8 + $0x30] sm:$0xff] %v861
    %1386 = vst [vmem:[#allocation8 + $0x38] sm:$0xff] %v862
    %1387 = vst [vmem:[#allocation8 + $0x40] sm:$0xff] %v863
    %1388 = vst [vmem:[#allocation8 + $0x48] sm:$0xff] %v864
    %1389 = vst [vmem:[#allocation8 + $0x50] sm:$0xff] %v865
    %1390 = vst [vmem:[#allocation8 + $0x58] sm:$0xff] %v866
    %1391 = vst [vmem:[#allocation8 + $0x60] sm:$0xff] %v867
    %1392 = vst [vmem:[#allocation8 + $0x68] sm:$0xff] %v868
    %1393 = vst [vmem:[#allocation8 + $0x70] sm:$0xff] %v869
    %1394 = vst [vmem:[#allocation8 + $0x78] sm:$0xff] %v870
    %1395 = vst [vmem:[#allocation8 + $0x80] sm:$0xff] %v871
    %1396 = vst [vmem:[#allocation8 + $0x88] sm:$0xff] %v872
    %1397 = vst [vmem:[#allocation8 + $0x90] sm:$0xff] %v873
    %1398 = vst [vmem:[#allocation8 + $0x98] sm:$0xff] %v874
    %1399 = vst [vmem:[#allocation8 + $0xa0] sm:$0xff] %v875
    %1400 = vst [vmem:[#allocation8 + $0xa8] sm:$0xff] %v876
    %1401 = vst [vmem:[#allocation8 + $0xb0] sm:$0xff] %v877
    %1402 = vst [vmem:[#allocation8 + $0xb8] sm:$0xff] %v878
    %1403 = vst [vmem:[#allocation8 + $0xc0] sm:$0xff] %v879
    %1404 = vst [vmem:[#allocation9] sm:$0xff] %v1378
    // Predicated region
    $region26: #{tpu_custom_call.1} parent=1 // pred_check
      _
    $region27: #{tpu_custom_call.1} parent=1 // pred_check_branch
      %1406 = sbr.rel (0) target = $region29
    $region28: #{tpu_custom_call.1} parent=1 // pred_region
      %s1408 = ssub.s32 3200, 3200
      %1409 = vsyncadd [#allocation4], %s1408
      %s1410 = sshll.u32 [#allocation8], 4
      %s1411 = int_to_ptr.vmem [resolvable:$true] %s1410
      %1416 = dma.vmem_to_hbm [thread:$0]  %s1411, 3200, %s3, [#allocation4], 128, 128, 8
    $region29: #{tpu_custom_call.1} parent=1 // pred_fallthru
      _
    // Predicated region
    $region30: #{tpu_custom_call.1} parent=1 // pred_check
      _
    $region31: #{tpu_custom_call.1} parent=1 // pred_check_branch
      %1418 = sbr.rel (0) target = $region33
    $region32: #{tpu_custom_call.1} parent=1 // pred_region
      %s1420 = ssub.s32 128, 128
      %1421 = vsyncadd [#allocation10], %s1420
      %s1423 = sshll.u32 [#allocation9], 4
      %s1424 = int_to_ptr.vmem [resolvable:$true] %s1423
      %1426 = dma.vmem_to_hbm [thread:$0]  %s1424, 128, %s4, [#allocation10]
    $region33: #{tpu_custom_call.1} parent=1 // pred_fallthru
      _
    // Predicated region
    $region34: #{tpu_custom_call.1} parent=1 // pred_check
      _
    $region35: #{tpu_custom_call.1} parent=1 // pred_check_branch
      %1428 = sbr.rel (0) target = $region37
    $region36: #{tpu_custom_call.1} parent=1 // pred_region
      %1429 = dma.done [#allocation4], 3200
    $region37: #{tpu_custom_call.1} parent=1 // pred_fallthru
      _
    // Predicated region
    $region38: #{tpu_custom_call.1} parent=1 // pred_check
      _
    $region39: #{tpu_custom_call.1} parent=1 // pred_check_branch
      %1431 = sbr.rel (0) target = $region41
    $region40: #{tpu_custom_call.1} parent=1 // pred_region
      %1432 = dma.done [#allocation10], 128
    $region41: #{tpu_custom_call.1} parent=1 // pred_fallthru
      _
    %1433 = vsyncpa [#allocation3], 1
    %1434 = vsyncpa [#allocation6], 1
    %1435 = vsyncpa [#allocation4], 1
    %1436 = vsyncpa [#allocation10], 1

</llo_original>
